<compile_context>
chip_gen: v5e
topology: v5e:2x2
jax: 0.10.0
libtpu: 0.0.40
codegen_flags: <defaults>
</compile_context>

<pallas_src>
import math

import jax
import jax.numpy as jnp
from jax.experimental import pallas as pl
from jax.experimental.pallas import tpu as pltpu


# ----------------------------- fused kernel --------------------------------

def _ln_rows(v, g, b, eps=1e-5):
    # LayerNorm over the last (lane) axis of a small (rows, C) tile.
    mu = jnp.mean(v, axis=-1, keepdims=True)
    c = v - mu
    var = jnp.mean(c * c, axis=-1, keepdims=True)
    return c * jax.lax.rsqrt(var + jnp.float32(eps)) * g + b


def _sgap_fused_kernel(x_ref, conv_w_ref, fc1_w_ref, fc2a_w_ref, fc2m_w_ref,
                       vec2d_ref, vecd_ref,
                       out_ref,
                       xpad_ref, zpad_ref):
    f32 = jnp.float32
    x = x_ref[0]                                   # (H, W, Cin)
    H, W, Cin = x.shape
    dim = out_ref.shape[-1]
    HW = H * W

    # -- unpack small packed parameter vectors --------------------------------
    v2 = vec2d_ref[...]                            # (3, 2*dim)
    f1_b, g1, b1 = v2[0:1], v2[1:2], v2[2:3]
    vd = vecd_ref[...]                             # (9, dim)
    conv_b = vd[0:1]                               # folded dw/pw/BN conv bias
    f2a_b, g2a, b2a = vd[1:2], vd[2:3], vd[3:4]
    f2m_b, g2m, b2m = vd[4:5], vd[5:6], vd[6:7]
    g3, b3 = vd[7:8], vd[8:9]

    # -- zero-padded conv input: write only the 1-px halo with zeros ---------
    # (interior is fully overwritten every step; halo-only zeroing saves a
    #  whole-buffer store pass per step and stays correct under megacore
    #  sharding, unlike a program_id==0 guard.)
    zrow_x = jnp.zeros((1, W + 2, Cin), f32)
    zcol_x = jnp.zeros((H + 2, 1, Cin), f32)
    xpad_ref[0:1, :, :] = zrow_x
    xpad_ref[H + 1:H + 2, :, :] = zrow_x
    xpad_ref[:, 0:1, :] = zcol_x
    xpad_ref[:, W + 1:W + 2, :] = zcol_x
    xpad_ref[1:H + 1, 1:W + 1, :] = x
    xp = xpad_ref[...]                             # (H+2, W+2, Cin)

    # -- depthwise 3x3 + 1x1 conv + BN, folded into 9 MXU matmuls ------------
    cw = conv_w_ref[...]                           # (9, Cin, dim) per-tap weights
    acc = jnp.zeros((HW, dim), f32)
    for k in range(9):
        di, dj = divmod(k, 3)
        win = xp[di:di + H, dj:dj + W, :].reshape(HW, Cin)
        acc = acc + jnp.dot(win, cw[k], preferred_element_type=f32)
    z = jnp.maximum(acc + conv_b, 0.0)             # (HW, dim), ReLU => z >= 0

    # -- 3x3 / stride-1 avg & max pool, separable, shared zero padding -------
    # (zero padding is exact for MaxPool ONLY because z >= 0 after ReLU;
    #  if anything is ever inserted between the ReLU and the pools, this
    #  assumption must be revisited.)
    zrow_z = jnp.zeros((1, W + 2, dim), f32)
    zcol_z = jnp.zeros((H + 2, 1, dim), f32)
    zpad_ref[0:1, :, :] = zrow_z
    zpad_ref[H + 1:H + 2, :, :] = zrow_z
    zpad_ref[:, 0:1, :] = zcol_z
    zpad_ref[:, W + 1:W + 2, :] = zcol_z
    zpad_ref[1:H + 1, 1:W + 1, :] = z.reshape(H, W, dim)
    zp = zpad_ref[...]                             # (H+2, W+2, dim)

    vs = zp[0:H] + zp[1:H + 1] + zp[2:H + 2]                        # vertical
    vm = jnp.maximum(jnp.maximum(zp[0:H], zp[1:H + 1]), zp[2:H + 2])
    xap = ((vs[:, 0:W] + vs[:, 1:W + 1] + vs[:, 2:W + 2])           # horizontal
           * f32(1.0 / 9.0)).reshape(HW, dim)
    xmp = jnp.maximum(jnp.maximum(vm[:, 0:W], vm[:, 1:W + 1]),
                      vm[:, 2:W + 2]).reshape(HW, dim)

    # -- attention MLP on the global-mean-pooled (1, 2*dim) vector -----------
    inv_hw = f32(1.0 / HW)
    pa = jnp.sum(xap, axis=0, keepdims=True) * inv_hw               # (1, dim)
    pm = jnp.sum(xmp, axis=0, keepdims=True) * inv_hw               # (1, dim)
    pooled = jnp.concatenate([pa, pm], axis=-1)                     # (1, 2*dim)

    h1 = _ln_rows(jnp.dot(pooled, fc1_w_ref[...],
                          preferred_element_type=f32) + f1_b, g1, b1)
    ba = _ln_rows(jnp.dot(h1, fc2a_w_ref[...],
                          preferred_element_type=f32) + f2a_b, g2a, b2a)
    bm = _ln_rows(jnp.dot(h1, fc2m_w_ref[...],
                          preferred_element_type=f32) + f2m_b, g2m, b2m)
    mx = jnp.maximum(ba, bm)
    ea = jnp.exp(ba - mx)
    em = jnp.exp(bm - mx)
    inv_den = 1.0 / (ea + em)
    a0 = ea * inv_den                              # (1, dim) weight for xap
    a1 = em * inv_den                              # (1, dim) weight for xmp

    # -- weighted combine + LayerNorm (centered two-pass, EUP rsqrt) ---------
    comb = xap * a0 + xmp * a1                     # (HW, dim)
    inv_d = f32(1.0 / dim)
    mu = jnp.sum(comb, axis=-1, keepdims=True) * inv_d
    c = comb - mu
    var = jnp.sum(c * c, axis=-1, keepdims=True) * inv_d
    out_ref[0] = c * jax.lax.rsqrt(var + f32(1e-5)) * g3 + b3


# ----------------------------- wrapper --------------------------------------

def _pick_vmem_limit(H, W, Cin, dim):
    """Size vmem_limit_bytes from the actual per-step footprint, with headroom,
    capped below physical VMEM (64 MiB v7x fallback if the query fails)."""
    d2 = 2 * dim
    elems = (2 * H * W * Cin                      # double-buffered input block
             + 2 * H * W * dim                    # double-buffered output block
             + 2 * (9 * Cin * dim + d2 * d2 + 2 * d2 * dim + 3 * d2 + 9 * dim)
             + (H + 2) * (W + 2) * (Cin + dim)    # padded scratch buffers
             + 8 * H * W * dim)                   # live f32 intermediates
    need = elems * 4
    try:
        phys = int(pltpu.get_tpu_info().vmem_capacity_bytes)
    except Exception:
        phys = 64 * 1024 * 1024                   # v7x per-core (most restrictive)
    cap = int(phys * 0.85)
    return int(max(32 * 1024 * 1024, min(int(need * 1.5), cap)))


def sgap_forward(x_tokens, params):
    B, N, Cin = x_tokens.shape
    H = W = int(math.sqrt(N))
    if H * W != N:
        raise ValueError(f"SGAP expects a square token grid, got N={N}")
    dim = params["pw_w"].shape[1]
    d2 = 2 * dim

    # 'b (h w) c -> b c h w' in torch == NHWC here (h slower than w).
    x_nhwc = x_tokens.reshape(B, H, W, Cin).astype(jnp.float32)

    # Fold BatchNorm (inference affine) into the 1x1 conv.
    bn_scale = params["bn_gamma"] * jax.lax.rsqrt(params["bn_var"] + 1e-5)
    bn_shift = params["bn_beta"] - params["bn_mean"] * bn_scale
    pw_w_f = params["pw_w"] * bn_scale[None, :]                      # (Cin, dim)
    pw_b_f = params["pw_b"] * bn_scale + bn_shift                    # (dim,)

    # Fold the depthwise 3x3 taps into the (BN-folded) 1x1 conv so the whole
    # conv stack runs on the MXU:  W_k[c, d] = dw_w[k, c] * pw_w_f[c, d].
    conv_w = params["dw_w"][:, :, None] * pw_w_f[None, :, :]         # (9, Cin, dim)
    conv_b = params["dw_b"] @ pw_w_f + pw_b_f                        # (dim,)

    # Pack small per-channel vectors to minimize per-step DMA count.
    vec2d = jnp.stack([params["fc1_b"], params["ln1_g"], params["ln1_b"]],
                      axis=0)                                        # (3, 2*dim)
    vecd = jnp.stack([conv_b,
                      params["fc2a_b"], params["ln2a_g"], params["ln2a_b"],
                      params["fc2m_b"], params["ln2m_g"], params["ln2m_b"],
                      params["ln3_g"], params["ln3_b"]], axis=0)     # (9, dim)

    # NOTE: dropout in the module has p=0.0 (eval) -> identity, omitted.
    # TODO(synk): for realistic ViT sizes on v7x (64 MiB VMEM), add a row-tile
    # grid axis with a 1-row halo and a partial-sum / finalize split of the
    # global pooling; whole-image residency is optimal at these test shapes.
    out = pl.pallas_call(
        _sgap_fused_kernel,
        out_shape=jax.ShapeDtypeStruct((B, H * W, dim), jnp.float32),
        grid=(B,),
        in_specs=[
            pl.BlockSpec((1, H, W, Cin), lambda b: (b, 0, 0, 0)),
            pl.BlockSpec((9, Cin, dim), lambda b: (0, 0, 0)),
            pl.BlockSpec((d2, d2), lambda b: (0, 0)),
            pl.BlockSpec((d2, dim), lambda b: (0, 0)),
            pl.BlockSpec((d2, dim), lambda b: (0, 0)),
            pl.BlockSpec((3, d2), lambda b: (0, 0)),
            pl.BlockSpec((9, dim), lambda b: (0, 0)),
        ],
        out_specs=pl.BlockSpec((1, H * W, dim), lambda b: (b, 0, 0)),
        scratch_shapes=[
            pltpu.VMEM((H + 2, W + 2, Cin), jnp.float32),   # padded conv input
            pltpu.VMEM((H + 2, W + 2, dim), jnp.float32),   # padded pool input
        ],
        compiler_params=pltpu.CompilerParams(
            dimension_semantics=("parallel",),
            vmem_limit_bytes=_pick_vmem_limit(H, W, Cin, dim)),
    )(x_nhwc, conv_w, params["fc1_w"], params["fc2a_w"], params["fc2m_w"],
      vec2d, vecd)
    return out


# ----------------------------- params & reference ---------------------------

def init_params(key, in_channels, dim):
    ks = jax.random.split(key, 22)
    d2 = 2 * dim
    n = lambda k, s: jax.random.normal(k, s, jnp.float32)
    return {
        "dw_w": n(ks[0], (9, in_channels)) * 0.2,
        "dw_b": n(ks[1], (in_channels,)) * 0.05,
        "pw_w": n(ks[2], (in_channels, dim)) * 0.2,
        "pw_b": n(ks[3], (dim,)) * 0.05,
        "bn_gamma": 1.0 + 0.1 * n(ks[4], (dim,)),
        "bn_beta": 0.05 * n(ks[5], (dim,)),
        "bn_mean": 0.1 * n(ks[6], (dim,)),
        "bn_var": 1.0 + jax.nn.softplus(n(ks[7], (dim,))),
        "fc1_w": n(ks[8], (d2, d2)) * 0.1,
        "fc1_b": n(ks[9], (d2,)) * 0.05,
        "ln1_g": 1.0 + 0.1 * n(ks[10], (d2,)),
        "ln1_b": 0.05 * n(ks[11], (d2,)),
        "fc2a_w": n(ks[12], (d2, dim)) * 0.1,
        "fc2a_b": n(ks[13], (dim,)) * 0.05,
        "ln2a_g": 1.0 + 0.1 * n(ks[14], (dim,)),
        "ln2a_b": 0.05 * n(ks[15], (dim,)),
        "fc2m_w": n(ks[16], (d2, dim)) * 0.1,
        "fc2m_b": n(ks[17], (dim,)) * 0.05,
        "ln2m_g": 1.0 + 0.1 * n(ks[18], (dim,)),
        "ln2m_b": 0.05 * n(ks[19], (dim,)),
        "ln3_g": 1.0 + 0.1 * n(ks[20], (dim,)),
        "ln3_b": 0.05 * n(ks[21], (dim,)),
    }


def _sgap_reference(x_tokens, params):
    """Plain-JAX mirror of the PyTorch SGAP forward (for sanity checking)."""
    B, N, Cin = x_tokens.shape
    H = W = int(math.sqrt(N))
    dim = params["pw_w"].shape[1]
    x = x_tokens.reshape(B, H, W, Cin).astype(jnp.float32)

    xp = jnp.pad(x, ((0, 0), (1, 1), (1, 1), (0, 0)))
    dw = params["dw_w"].reshape(3, 3, Cin)
    acc = jnp.zeros((B, H, W, Cin), jnp.float32)
    for di in range(3):
        for dj in range(3):
            acc = acc + xp[:, di:di + H, dj:dj + W, :] * dw[di, dj]
    acc = acc + params["dw_b"]

    bn_scale = params["bn_gamma"] / jnp.sqrt(params["bn_var"] + 1e-5)
    bn_shift = params["bn_beta"] - params["bn_mean"] * bn_scale
    y = jnp.einsum("bhwc,cd->bhwd", acc, params["pw_w"]) + params["pw_b"]
    z = jnp.maximum(y * bn_scale + bn_shift, 0.0)

    zp = jnp.pad(z, ((0, 0), (1, 1), (1, 1), (0, 0)))
    zn = jnp.pad(z, ((0, 0), (1, 1), (1, 1), (0, 0)),
                 constant_values=-jnp.inf)
    s = jnp.zeros_like(z)
    m = jnp.full_like(z, -jnp.inf)
    for di in range(3):
        for dj in range(3):
            s = s + zp[:, di:di + H, dj:dj + W, :]
            m = jnp.maximum(m, zn[:, di:di + H, dj:dj + W, :])
    xap, xmp = s / 9.0, m

    def ln(v, g, b):
        mu = v.mean(-1, keepdims=True)
        c = v - mu
        return c / jnp.sqrt((c * c).mean(-1, keepdims=True) + 1e-5) * g + b

    pooled = jnp.concatenate([xap.mean(axis=(1, 2)), xmp.mean(axis=(1, 2))],
                             axis=-1)
    h1 = ln(pooled @ params["fc1_w"] + params["fc1_b"],
            params["ln1_g"], params["ln1_b"])
    ba = ln(h1 @ params["fc2a_w"] + params["fc2a_b"],
            params["ln2a_g"], params["ln2a_b"])
    bm = ln(h1 @ params["fc2m_w"] + params["fc2m_b"],
            params["ln2m_g"], params["ln2m_b"])
    w = jax.nn.softmax(jnp.stack([ba, bm], axis=-1), axis=-1)    # (B, dim, 2)
    comb = xap * w[:, None, None, :, 0] + xmp * w[:, None, None, :, 1]
    out = ln(comb, params["ln3_g"], params["ln3_b"])
    return out.reshape(B, H * W, dim)


# ----------------------------- main ------------------------------------------

if __name__ == "__main__":
    key = jax.random.PRNGKey(0)
    k_x, k_p = jax.random.split(key)

    B, in_channels, dim, H = 2, 8, 16, 8
    N = H * H                                      # square patch grid
    x = jax.random.normal(k_x, (B, N, in_channels), jnp.float32)
    params = init_params(k_p, in_channels, dim)

    fwd = jax.jit(sgap_forward)
    out = jax.block_until_ready(fwd(x, params))

    assert out.shape == (B, N, dim), out.shape
    assert bool(jnp.all(jnp.isfinite(out)))

    # Sanity check against the plain-JAX reference (loose tol: MXU f32 matmul
    # precision + dw/pw/BN weight-folding reorder cause small numeric drift).
    ref = _sgap_reference(x, params)
    max_err = float(jnp.max(jnp.abs(out - ref)))
    assert max_err < 5e-2, f"max abs err vs reference = {max_err}"

    print("KERNEL_OK")
</pallas_src>

<mosaic_0001>
module attributes {stable_mosaic.version = 11 : i64} {
  func.func @_sgap_fused_kernel(%arg0: i32, %arg1: memref<1x8x8x8xf32, #tpu.memory_space<vmem>>, %arg2: memref<9x8x16xf32, #tpu.memory_space<vmem>>, %arg3: memref<32x32xf32, #tpu.memory_space<vmem>>, %arg4: memref<32x16xf32, #tpu.memory_space<vmem>>, %arg5: memref<32x16xf32, #tpu.memory_space<vmem>>, %arg6: memref<3x32xf32, #tpu.memory_space<vmem>>, %arg7: memref<9x16xf32, #tpu.memory_space<vmem>>, %arg8: memref<1x64x16xf32, #tpu.memory_space<vmem>>, %arg9: memref<10x10x8xf32, #tpu.memory_space<vmem>>, %arg10: memref<10x10x16xf32, #tpu.memory_space<vmem>>) attributes {dimension_semantics = [#tpu.dimension_semantics<parallel>], iteration_bounds = array<i64: 2>, scalar_prefetch = 0 : i64, scratch_operands = 2 : i64, tpu.core_type = #tpu.core_type<tc>, window_params = [{transform_indices = @transform_0, window_bounds = array<i64: 1, 8, 8, 8>}, {pipeline_mode = #tpu.pipeline_mode<synchronous>, transform_indices = @transform_1, window_bounds = array<i64: 9, 8, 16>}, {pipeline_mode = #tpu.pipeline_mode<synchronous>, transform_indices = @transform_2, window_bounds = array<i64: 32, 32>}, {pipeline_mode = #tpu.pipeline_mode<synchronous>, transform_indices = @transform_3, window_bounds = array<i64: 32, 16>}, {pipeline_mode = #tpu.pipeline_mode<synchronous>, transform_indices = @transform_4, window_bounds = array<i64: 32, 16>}, {pipeline_mode = #tpu.pipeline_mode<synchronous>, transform_indices = @transform_5, window_bounds = array<i64: 3, 32>}, {pipeline_mode = #tpu.pipeline_mode<synchronous>, transform_indices = @transform_6, window_bounds = array<i64: 9, 16>}, {transform_indices = @transform_7, window_bounds = array<i64: 1, 64, 16>}]} {
    %c0 = arith.constant 0 : index
    %c0_0 = arith.constant 0 : index
    %c0_1 = arith.constant 0 : index
    %c0_2 = arith.constant 0 : index
    %0 = vector.load %arg1[%c0, %c0_0, %c0_1, %c0_2] : memref<1x8x8x8xf32, #tpu.memory_space<vmem>>, vector<1x8x8x8xf32>
    %1 = vector.shape_cast %0 : vector<1x8x8x8xf32> to vector<8x8x8xf32>
    %c0_3 = arith.constant 0 : index
    %c0_4 = arith.constant 0 : index
    %2 = vector.load %arg6[%c0_3, %c0_4] : memref<3x32xf32, #tpu.memory_space<vmem>>, vector<3x32xf32>
    %3 = vector.extract_strided_slice %2 {offsets = [0, 0], sizes = [1, 32], strides = [1, 1]} : vector<3x32xf32> to vector<1x32xf32>
    %4 = vector.extract_strided_slice %2 {offsets = [1, 0], sizes = [1, 32], strides = [1, 1]} : vector<3x32xf32> to vector<1x32xf32>
    %5 = vector.extract_strided_slice %2 {offsets = [2, 0], sizes = [1, 32], strides = [1, 1]} : vector<3x32xf32> to vector<1x32xf32>
    %c0_5 = arith.constant 0 : index
    %c0_6 = arith.constant 0 : index
    %6 = vector.load %arg7[%c0_5, %c0_6] : memref<9x16xf32, #tpu.memory_space<vmem>>, vector<9x16xf32>
    %7 = vector.extract_strided_slice %6 {offsets = [0, 0], sizes = [1, 16], strides = [1, 1]} : vector<9x16xf32> to vector<1x16xf32>
    %8 = vector.extract_strided_slice %6 {offsets = [1, 0], sizes = [1, 16], strides = [1, 1]} : vector<9x16xf32> to vector<1x16xf32>
    %9 = vector.extract_strided_slice %6 {offsets = [2, 0], sizes = [1, 16], strides = [1, 1]} : vector<9x16xf32> to vector<1x16xf32>
    %10 = vector.extract_strided_slice %6 {offsets = [3, 0], sizes = [1, 16], strides = [1, 1]} : vector<9x16xf32> to vector<1x16xf32>
    %11 = vector.extract_strided_slice %6 {offsets = [4, 0], sizes = [1, 16], strides = [1, 1]} : vector<9x16xf32> to vector<1x16xf32>
    %12 = vector.extract_strided_slice %6 {offsets = [5, 0], sizes = [1, 16], strides = [1, 1]} : vector<9x16xf32> to vector<1x16xf32>
    %13 = vector.extract_strided_slice %6 {offsets = [6, 0], sizes = [1, 16], strides = [1, 1]} : vector<9x16xf32> to vector<1x16xf32>
    %14 = vector.extract_strided_slice %6 {offsets = [7, 0], sizes = [1, 16], strides = [1, 1]} : vector<9x16xf32> to vector<1x16xf32>
    %15 = vector.extract_strided_slice %6 {offsets = [8, 0], sizes = [1, 16], strides = [1, 1]} : vector<9x16xf32> to vector<1x16xf32>
    %cst = arith.constant 0.000000e+00 : f32
    %16 = vector.broadcast %cst : f32 to vector<1x10x8xf32>
    %cst_7 = arith.constant 0.000000e+00 : f32
    %17 = vector.broadcast %cst_7 : f32 to vector<10x1x8xf32>
    %c0_8 = arith.constant 0 : index
    %c0_9 = arith.constant 0 : index
    %c0_10 = arith.constant 0 : index
    %18 = vector.load %arg9[%c0_8, %c0_9, %c0_10] : memref<10x10x8xf32, #tpu.memory_space<vmem>>, vector<1x10x8xf32>
    tpu.vector_store %arg9[%c0_8, %c0_9, %c0_10], %16 {strides = array<i32>} : memref<10x10x8xf32, #tpu.memory_space<vmem>>, vector<1x10x8xf32>,
    %c9 = arith.constant 9 : index
    %c0_11 = arith.constant 0 : index
    %c0_12 = arith.constant 0 : index
    %19 = vector.load %arg9[%c9, %c0_11, %c0_12] : memref<10x10x8xf32, #tpu.memory_space<vmem>>, vector<1x10x8xf32>
    tpu.vector_store %arg9[%c9, %c0_11, %c0_12], %16 {strides = array<i32>} : memref<10x10x8xf32, #tpu.memory_space<vmem>>, vector<1x10x8xf32>,
    %c0_13 = arith.constant 0 : index
    %c0_14 = arith.constant 0 : index
    %c0_15 = arith.constant 0 : index
    %20 = vector.load %arg9[%c0_13, %c0_14, %c0_15] : memref<10x10x8xf32, #tpu.memory_space<vmem>>, vector<10x1x8xf32>
    tpu.vector_store %arg9[%c0_13, %c0_14, %c0_15], %17 {strides = array<i32>} : memref<10x10x8xf32, #tpu.memory_space<vmem>>, vector<10x1x8xf32>,
    %c0_16 = arith.constant 0 : index
    %c9_17 = arith.constant 9 : index
    %c0_18 = arith.constant 0 : index
    %21 = vector.load %arg9[%c0_16, %c9_17, %c0_18] : memref<10x10x8xf32, #tpu.memory_space<vmem>>, vector<10x1x8xf32>
    tpu.vector_store %arg9[%c0_16, %c9_17, %c0_18], %17 {strides = array<i32>} : memref<10x10x8xf32, #tpu.memory_space<vmem>>, vector<10x1x8xf32>,
    %c1 = arith.constant 1 : index
    %c1_19 = arith.constant 1 : index
    %c0_20 = arith.constant 0 : index
    %22 = vector.load %arg9[%c1, %c1_19, %c0_20] : memref<10x10x8xf32, #tpu.memory_space<vmem>>, vector<8x8x8xf32>
    tpu.vector_store %arg9[%c1, %c1_19, %c0_20], %1 {strides = array<i32>} : memref<10x10x8xf32, #tpu.memory_space<vmem>>, vector<8x8x8xf32>,
    %c0_21 = arith.constant 0 : index
    %c0_22 = arith.constant 0 : index
    %c0_23 = arith.constant 0 : index
    %23 = vector.load %arg9[%c0_21, %c0_22, %c0_23] : memref<10x10x8xf32, #tpu.memory_space<vmem>>, vector<10x10x8xf32>
    %c0_24 = arith.constant 0 : index
    %c0_25 = arith.constant 0 : index
    %c0_26 = arith.constant 0 : index
    %24 = vector.load %arg2[%c0_24, %c0_25, %c0_26] : memref<9x8x16xf32, #tpu.memory_space<vmem>>, vector<9x8x16xf32>
    %cst_27 = arith.constant 0.000000e+00 : f32
    %25 = vector.broadcast %cst_27 : f32 to vector<64x16xf32>
    %26 = vector.extract_strided_slice %23 {offsets = [0, 0, 0], sizes = [8, 8, 8], strides = [1, 1, 1]} : vector<10x10x8xf32> to vector<8x8x8xf32>
    %27 = vector.shape_cast %26 : vector<8x8x8xf32> to vector<64x8xf32>
    %28 = vector.extract_strided_slice %24 {offsets = [0, 0, 0], sizes = [1, 8, 16], strides = [1, 1, 1]} : vector<9x8x16xf32> to vector<1x8x16xf32>
    %29 = vector.shape_cast %28 : vector<1x8x16xf32> to vector<8x16xf32>
    %cst_28 = arith.constant dense<0.000000e+00> : vector<64x16xf32>
    %30 = tpu.matmul %27, %29, %cst_28 {dimension_numbers = #tpu.dot_dimension_numbers<[1], [0], [0], [1], [0, 0, 1, 1], [], []>} : vector<64x8xf32>, vector<8x16xf32>, vector<64x16xf32> -> vector<64x16xf32>
    %31 = arith.addf %25, %30 : vector<64x16xf32>
    %32 = vector.extract_strided_slice %23 {offsets = [0, 1, 0], sizes = [8, 8, 8], strides = [1, 1, 1]} : vector<10x10x8xf32> to vector<8x8x8xf32>
    %33 = vector.shape_cast %32 : vector<8x8x8xf32> to vector<64x8xf32>
    %34 = vector.extract_strided_slice %24 {offsets = [1, 0, 0], sizes = [1, 8, 16], strides = [1, 1, 1]} : vector<9x8x16xf32> to vector<1x8x16xf32>
    %35 = vector.shape_cast %34 : vector<1x8x16xf32> to vector<8x16xf32>
    %cst_29 = arith.constant dense<0.000000e+00> : vector<64x16xf32>
    %36 = tpu.matmul %33, %35, %cst_29 {dimension_numbers = #tpu.dot_dimension_numbers<[1], [0], [0], [1], [0, 0, 1, 1], [], []>} : vector<64x8xf32>, vector<8x16xf32>, vector<64x16xf32> -> vector<64x16xf32>
    %37 = arith.addf %31, %36 : vector<64x16xf32>
    %38 = vector.extract_strided_slice %23 {offsets = [0, 2, 0], sizes = [8, 8, 8], strides = [1, 1, 1]} : vector<10x10x8xf32> to vector<8x8x8xf32>
    %39 = vector.shape_cast %38 : vector<8x8x8xf32> to vector<64x8xf32>
    %40 = vector.extract_strided_slice %24 {offsets = [2, 0, 0], sizes = [1, 8, 16], strides = [1, 1, 1]} : vector<9x8x16xf32> to vector<1x8x16xf32>
    %41 = vector.shape_cast %40 : vector<1x8x16xf32> to vector<8x16xf32>
    %cst_30 = arith.constant dense<0.000000e+00> : vector<64x16xf32>
    %42 = tpu.matmul %39, %41, %cst_30 {dimension_numbers = #tpu.dot_dimension_numbers<[1], [0], [0], [1], [0, 0, 1, 1], [], []>} : vector<64x8xf32>, vector<8x16xf32>, vector<64x16xf32> -> vector<64x16xf32>
    %43 = arith.addf %37, %42 : vector<64x16xf32>
    %44 = vector.extract_strided_slice %23 {offsets = [1, 0, 0], sizes = [8, 8, 8], strides = [1, 1, 1]} : vector<10x10x8xf32> to vector<8x8x8xf32>
    %45 = vector.shape_cast %44 : vector<8x8x8xf32> to vector<64x8xf32>
    %46 = vector.extract_strided_slice %24 {offsets = [3, 0, 0], sizes = [1, 8, 16], strides = [1, 1, 1]} : vector<9x8x16xf32> to vector<1x8x16xf32>
    %47 = vector.shape_cast %46 : vector<1x8x16xf32> to vector<8x16xf32>
    %cst_31 = arith.constant dense<0.000000e+00> : vector<64x16xf32>
    %48 = tpu.matmul %45, %47, %cst_31 {dimension_numbers = #tpu.dot_dimension_numbers<[1], [0], [0], [1], [0, 0, 1, 1], [], []>} : vector<64x8xf32>, vector<8x16xf32>, vector<64x16xf32> -> vector<64x16xf32>
    %49 = arith.addf %43, %48 : vector<64x16xf32>
    %50 = vector.extract_strided_slice %23 {offsets = [1, 1, 0], sizes = [8, 8, 8], strides = [1, 1, 1]} : vector<10x10x8xf32> to vector<8x8x8xf32>
    %51 = vector.shape_cast %50 : vector<8x8x8xf32> to vector<64x8xf32>
    %52 = vector.extract_strided_slice %24 {offsets = [4, 0, 0], sizes = [1, 8, 16], strides = [1, 1, 1]} : vector<9x8x16xf32> to vector<1x8x16xf32>
    %53 = vector.shape_cast %52 : vector<1x8x16xf32> to vector<8x16xf32>
    %cst_32 = arith.constant dense<0.000000e+00> : vector<64x16xf32>
    %54 = tpu.matmul %51, %53, %cst_32 {dimension_numbers = #tpu.dot_dimension_numbers<[1], [0], [0], [1], [0, 0, 1, 1], [], []>} : vector<64x8xf32>, vector<8x16xf32>, vector<64x16xf32> -> vector<64x16xf32>
    %55 = arith.addf %49, %54 : vector<64x16xf32>
    %56 = vector.extract_strided_slice %23 {offsets = [1, 2, 0], sizes = [8, 8, 8], strides = [1, 1, 1]} : vector<10x10x8xf32> to vector<8x8x8xf32>
    %57 = vector.shape_cast %56 : vector<8x8x8xf32> to vector<64x8xf32>
    %58 = vector.extract_strided_slice %24 {offsets = [5, 0, 0], sizes = [1, 8, 16], strides = [1, 1, 1]} : vector<9x8x16xf32> to vector<1x8x16xf32>
    %59 = vector.shape_cast %58 : vector<1x8x16xf32> to vector<8x16xf32>
    %cst_33 = arith.constant dense<0.000000e+00> : vector<64x16xf32>
    %60 = tpu.matmul %57, %59, %cst_33 {dimension_numbers = #tpu.dot_dimension_numbers<[1], [0], [0], [1], [0, 0, 1, 1], [], []>} : vector<64x8xf32>, vector<8x16xf32>, vector<64x16xf32> -> vector<64x16xf32>
    %61 = arith.addf %55, %60 : vector<64x16xf32>
    %62 = vector.extract_strided_slice %23 {offsets = [2, 0, 0], sizes = [8, 8, 8], strides = [1, 1, 1]} : vector<10x10x8xf32> to vector<8x8x8xf32>
    %63 = vector.shape_cast %62 : vector<8x8x8xf32> to vector<64x8xf32>
    %64 = vector.extract_strided_slice %24 {offsets = [6, 0, 0], sizes = [1, 8, 16], strides = [1, 1, 1]} : vector<9x8x16xf32> to vector<1x8x16xf32>
    %65 = vector.shape_cast %64 : vector<1x8x16xf32> to vector<8x16xf32>
    %cst_34 = arith.constant dense<0.000000e+00> : vector<64x16xf32>
    %66 = tpu.matmul %63, %65, %cst_34 {dimension_numbers = #tpu.dot_dimension_numbers<[1], [0], [0], [1], [0, 0, 1, 1], [], []>} : vector<64x8xf32>, vector<8x16xf32>, vector<64x16xf32> -> vector<64x16xf32>
    %67 = arith.addf %61, %66 : vector<64x16xf32>
    %68 = vector.extract_strided_slice %23 {offsets = [2, 1, 0], sizes = [8, 8, 8], strides = [1, 1, 1]} : vector<10x10x8xf32> to vector<8x8x8xf32>
    %69 = vector.shape_cast %68 : vector<8x8x8xf32> to vector<64x8xf32>
    %70 = vector.extract_strided_slice %24 {offsets = [7, 0, 0], sizes = [1, 8, 16], strides = [1, 1, 1]} : vector<9x8x16xf32> to vector<1x8x16xf32>
    %71 = vector.shape_cast %70 : vector<1x8x16xf32> to vector<8x16xf32>
    %cst_35 = arith.constant dense<0.000000e+00> : vector<64x16xf32>
    %72 = tpu.matmul %69, %71, %cst_35 {dimension_numbers = #tpu.dot_dimension_numbers<[1], [0], [0], [1], [0, 0, 1, 1], [], []>} : vector<64x8xf32>, vector<8x16xf32>, vector<64x16xf32> -> vector<64x16xf32>
    %73 = arith.addf %67, %72 : vector<64x16xf32>
    %74 = vector.extract_strided_slice %23 {offsets = [2, 2, 0], sizes = [8, 8, 8], strides = [1, 1, 1]} : vector<10x10x8xf32> to vector<8x8x8xf32>
    %75 = vector.shape_cast %74 : vector<8x8x8xf32> to vector<64x8xf32>
    %76 = vector.extract_strided_slice %24 {offsets = [8, 0, 0], sizes = [1, 8, 16], strides = [1, 1, 1]} : vector<9x8x16xf32> to vector<1x8x16xf32>
    %77 = vector.shape_cast %76 : vector<1x8x16xf32> to vector<8x16xf32>
    %cst_36 = arith.constant dense<0.000000e+00> : vector<64x16xf32>
    %78 = tpu.matmul %75, %77, %cst_36 {dimension_numbers = #tpu.dot_dimension_numbers<[1], [0], [0], [1], [0, 0, 1, 1], [], []>} : vector<64x8xf32>, vector<8x16xf32>, vector<64x16xf32> -> vector<64x16xf32>
    %79 = arith.addf %73, %78 : vector<64x16xf32>
    %80 = vector.broadcast %7 : vector<1x16xf32> to vector<64x16xf32>
    %81 = arith.addf %79, %80 : vector<64x16xf32>
    %cst_37 = arith.constant 0.000000e+00 : f32
    %82 = vector.broadcast %cst_37 : f32 to vector<64x16xf32>
    %83 = arith.maximumf %81, %82 : vector<64x16xf32>
    %cst_38 = arith.constant 0.000000e+00 : f32
    %84 = vector.broadcast %cst_38 : f32 to vector<1x10x16xf32>
    %cst_39 = arith.constant 0.000000e+00 : f32
    %85 = vector.broadcast %cst_39 : f32 to vector<10x1x16xf32>
    %c0_40 = arith.constant 0 : index
    %c0_41 = arith.constant 0 : index
    %c0_42 = arith.constant 0 : index
    %86 = vector.load %arg10[%c0_40, %c0_41, %c0_42] : memref<10x10x16xf32, #tpu.memory_space<vmem>>, vector<1x10x16xf32>
    tpu.vector_store %arg10[%c0_40, %c0_41, %c0_42], %84 {strides = array<i32>} : memref<10x10x16xf32, #tpu.memory_space<vmem>>, vector<1x10x16xf32>,
    %c9_43 = arith.constant 9 : index
    %c0_44 = arith.constant 0 : index
    %c0_45 = arith.constant 0 : index
    %87 = vector.load %arg10[%c9_43, %c0_44, %c0_45] : memref<10x10x16xf32, #tpu.memory_space<vmem>>, vector<1x10x16xf32>
    tpu.vector_store %arg10[%c9_43, %c0_44, %c0_45], %84 {strides = array<i32>} : memref<10x10x16xf32, #tpu.memory_space<vmem>>, vector<1x10x16xf32>,
    %c0_46 = arith.constant 0 : index
    %c0_47 = arith.constant 0 : index
    %c0_48 = arith.constant 0 : index
    %88 = vector.load %arg10[%c0_46, %c0_47, %c0_48] : memref<10x10x16xf32, #tpu.memory_space<vmem>>, vector<10x1x16xf32>
    tpu.vector_store %arg10[%c0_46, %c0_47, %c0_48], %85 {strides = array<i32>} : memref<10x10x16xf32, #tpu.memory_space<vmem>>, vector<10x1x16xf32>,
    %c0_49 = arith.constant 0 : index
    %c9_50 = arith.constant 9 : index
    %c0_51 = arith.constant 0 : index
    %89 = vector.load %arg10[%c0_49, %c9_50, %c0_51] : memref<10x10x16xf32, #tpu.memory_space<vmem>>, vector<10x1x16xf32>
    tpu.vector_store %arg10[%c0_49, %c9_50, %c0_51], %85 {strides = array<i32>} : memref<10x10x16xf32, #tpu.memory_space<vmem>>, vector<10x1x16xf32>,
    %90 = vector.shape_cast %83 : vector<64x16xf32> to vector<8x8x16xf32>
    %c1_52 = arith.constant 1 : index
    %c1_53 = arith.constant 1 : index
    %c0_54 = arith.constant 0 : index
    %91 = vector.load %arg10[%c1_52, %c1_53, %c0_54] : memref<10x10x16xf32, #tpu.memory_space<vmem>>, vector<8x8x16xf32>
    tpu.vector_store %arg10[%c1_52, %c1_53, %c0_54], %90 {strides = array<i32>} : memref<10x10x16xf32, #tpu.memory_space<vmem>>, vector<8x8x16xf32>,
    %c0_55 = arith.constant 0 : index
    %c0_56 = arith.constant 0 : index
    %c0_57 = arith.constant 0 : index
    %92 = vector.load %arg10[%c0_55, %c0_56, %c0_57] : memref<10x10x16xf32, #tpu.memory_space<vmem>>, vector<10x10x16xf32>
    %93 = vector.extract_strided_slice %92 {offsets = [0, 0, 0], sizes = [8, 10, 16], strides = [1, 1, 1]} : vector<10x10x16xf32> to vector<8x10x16xf32>
    %94 = vector.extract_strided_slice %92 {offsets = [1, 0, 0], sizes = [8, 10, 16], strides = [1, 1, 1]} : vector<10x10x16xf32> to vector<8x10x16xf32>
    %95 = arith.addf %93, %94 : vector<8x10x16xf32>
    %96 = vector.extract_strided_slice %92 {offsets = [2, 0, 0], sizes = [8, 10, 16], strides = [1, 1, 1]} : vector<10x10x16xf32> to vector<8x10x16xf32>
    %97 = arith.addf %95, %96 : vector<8x10x16xf32>
    %98 = vector.extract_strided_slice %92 {offsets = [0, 0, 0], sizes = [8, 10, 16], strides = [1, 1, 1]} : vector<10x10x16xf32> to vector<8x10x16xf32>
    %99 = vector.extract_strided_slice %92 {offsets = [1, 0, 0], sizes = [8, 10, 16], strides = [1, 1, 1]} : vector<10x10x16xf32> to vector<8x10x16xf32>
    %100 = arith.maximumf %98, %99 : vector<8x10x16xf32>
    %101 = vector.extract_strided_slice %92 {offsets = [2, 0, 0], sizes = [8, 10, 16], strides = [1, 1, 1]} : vector<10x10x16xf32> to vector<8x10x16xf32>
    %102 = arith.maximumf %100, %101 : vector<8x10x16xf32>
    %103 = vector.extract_strided_slice %97 {offsets = [0, 0, 0], sizes = [8, 8, 16], strides = [1, 1, 1]} : vector<8x10x16xf32> to vector<8x8x16xf32>
    %104 = vector.extract_strided_slice %97 {offsets = [0, 1, 0], sizes = [8, 8, 16], strides = [1, 1, 1]} : vector<8x10x16xf32> to vector<8x8x16xf32>
    %105 = arith.addf %103, %104 : vector<8x8x16xf32>
    %106 = vector.extract_strided_slice %97 {offsets = [0, 2, 0], sizes = [8, 8, 16], strides = [1, 1, 1]} : vector<8x10x16xf32> to vector<8x8x16xf32>
    %107 = arith.addf %105, %106 : vector<8x8x16xf32>
    %cst_58 = arith.constant 0.111111112 : f32
    %108 = vector.broadcast %cst_58 : f32 to vector<8x8x16xf32>
    %109 = arith.mulf %107, %108 : vector<8x8x16xf32>
    %110 = vector.shape_cast %109 : vector<8x8x16xf32> to vector<64x16xf32>
    %111 = vector.extract_strided_slice %102 {offsets = [0, 0, 0], sizes = [8, 8, 16], strides = [1, 1, 1]} : vector<8x10x16xf32> to vector<8x8x16xf32>
    %112 = vector.extract_strided_slice %102 {offsets = [0, 1, 0], sizes = [8, 8, 16], strides = [1, 1, 1]} : vector<8x10x16xf32> to vector<8x8x16xf32>
    %113 = arith.maximumf %111, %112 : vector<8x8x16xf32>
    %114 = vector.extract_strided_slice %102 {offsets = [0, 2, 0], sizes = [8, 8, 16], strides = [1, 1, 1]} : vector<8x10x16xf32> to vector<8x8x16xf32>
    %115 = arith.maximumf %113, %114 : vector<8x8x16xf32>
    %116 = vector.shape_cast %115 : vector<8x8x16xf32> to vector<64x16xf32>
    %cst_59 = arith.constant dense<0.000000e+00> : vector<16xf32>
    %117 = vector.multi_reduction <add>, %110, %cst_59 [0] : vector<64x16xf32> to vector<16xf32>
    %118 = vector.shape_cast %117 : vector<16xf32> to vector<1x16xf32>
    %cst_60 = arith.constant 1.562500e-02 : f32
    %119 = vector.broadcast %cst_60 : f32 to vector<1x16xf32>
    %120 = arith.mulf %118, %119 : vector<1x16xf32>
    %cst_61 = arith.constant dense<0.000000e+00> : vector<16xf32>
    %121 = vector.multi_reduction <add>, %116, %cst_61 [0] : vector<64x16xf32> to vector<16xf32>
    %122 = vector.shape_cast %121 : vector<16xf32> to vector<1x16xf32>
    %cst_62 = arith.constant 1.562500e-02 : f32
    %123 = vector.broadcast %cst_62 : f32 to vector<1x16xf32>
    %124 = arith.mulf %122, %123 : vector<1x16xf32>
    %125 = tpu.concatenate %120, %124 in 1 : vector<1x16xf32>, vector<1x16xf32> -> vector<1x32xf32>
    %c0_63 = arith.constant 0 : index
    %c0_64 = arith.constant 0 : index
    %126 = vector.load %arg3[%c0_63, %c0_64] : memref<32x32xf32, #tpu.memory_space<vmem>>, vector<32x32xf32>
    %cst_65 = arith.constant dense<0.000000e+00> : vector<1x32xf32>
    %127 = tpu.matmul %125, %126, %cst_65 {dimension_numbers = #tpu.dot_dimension_numbers<[1], [0], [0], [1], [0, 0, 1, 1], [], []>} : vector<1x32xf32>, vector<32x32xf32>, vector<1x32xf32> -> vector<1x32xf32>
    %128 = arith.addf %127, %3 : vector<1x32xf32>
    %cst_66 = arith.constant dense<0.000000e+00> : vector<1xf32>
    %129 = vector.multi_reduction <add>, %128, %cst_66 [1] : vector<1x32xf32> to vector<1xf32>
    %130 = vector.shape_cast %129 : vector<1xf32> to vector<1x1xf32>
    %cst_67 = arith.constant 3.200000e+01 : f32
    %131 = vector.broadcast %cst_67 : f32 to vector<1x1xf32>
    %132 = arith.divf %130, %131 : vector<1x1xf32>
    %133 = vector.broadcast %132 : vector<1x1xf32> to vector<1x32xf32>
    %134 = arith.subf %128, %133 : vector<1x32xf32>
    %135 = arith.mulf %134, %134 : vector<1x32xf32>
    %cst_68 = arith.constant dense<0.000000e+00> : vector<1xf32>
    %136 = vector.multi_reduction <add>, %135, %cst_68 [1] : vector<1x32xf32> to vector<1xf32>
    %137 = vector.shape_cast %136 : vector<1xf32> to vector<1x1xf32>
    %cst_69 = arith.constant 3.200000e+01 : f32
    %138 = vector.broadcast %cst_69 : f32 to vector<1x1xf32>
    %139 = arith.divf %137, %138 : vector<1x1xf32>
    %cst_70 = arith.constant 9.99999974E-6 : f32
    %140 = vector.broadcast %cst_70 : f32 to vector<1x1xf32>
    %141 = arith.addf %139, %140 : vector<1x1xf32>
    %142 = math.rsqrt %141 : vector<1x1xf32>
    %143 = vector.broadcast %142 : vector<1x1xf32> to vector<1x32xf32>
    %144 = arith.mulf %134, %143 : vector<1x32xf32>
    %145 = arith.mulf %144, %4 : vector<1x32xf32>
    %146 = arith.addf %145, %5 : vector<1x32xf32>
    %c0_71 = arith.constant 0 : index
    %c0_72 = arith.constant 0 : index
    %147 = vector.load %arg4[%c0_71, %c0_72] : memref<32x16xf32, #tpu.memory_space<vmem>>, vector<32x16xf32>
    %cst_73 = arith.constant dense<0.000000e+00> : vector<1x16xf32>
    %148 = tpu.matmul %146, %147, %cst_73 {dimension_numbers = #tpu.dot_dimension_numbers<[1], [0], [0], [1], [0, 0, 1, 1], [], []>} : vector<1x32xf32>, vector<32x16xf32>, vector<1x16xf32> -> vector<1x16xf32>
    %149 = arith.addf %148, %8 : vector<1x16xf32>
    %cst_74 = arith.constant dense<0.000000e+00> : vector<1xf32>
    %150 = vector.multi_reduction <add>, %149, %cst_74 [1] : vector<1x16xf32> to vector<1xf32>
    %151 = vector.shape_cast %150 : vector<1xf32> to vector<1x1xf32>
    %cst_75 = arith.constant 1.600000e+01 : f32
    %152 = vector.broadcast %cst_75 : f32 to vector<1x1xf32>
    %153 = arith.divf %151, %152 : vector<1x1xf32>
    %154 = vector.broadcast %153 : vector<1x1xf32> to vector<1x16xf32>
    %155 = arith.subf %149, %154 : vector<1x16xf32>
    %156 = arith.mulf %155, %155 : vector<1x16xf32>
    %cst_76 = arith.constant dense<0.000000e+00> : vector<1xf32>
    %157 = vector.multi_reduction <add>, %156, %cst_76 [1] : vector<1x16xf32> to vector<1xf32>
    %158 = vector.shape_cast %157 : vector<1xf32> to vector<1x1xf32>
    %cst_77 = arith.constant 1.600000e+01 : f32
    %159 = vector.broadcast %cst_77 : f32 to vector<1x1xf32>
    %160 = arith.divf %158, %159 : vector<1x1xf32>
    %cst_78 = arith.constant 9.99999974E-6 : f32
    %161 = vector.broadcast %cst_78 : f32 to vector<1x1xf32>
    %162 = arith.addf %160, %161 : vector<1x1xf32>
    %163 = math.rsqrt %162 : vector<1x1xf32>
    %164 = vector.broadcast %163 : vector<1x1xf32> to vector<1x16xf32>
    %165 = arith.mulf %155, %164 : vector<1x16xf32>
    %166 = arith.mulf %165, %9 : vector<1x16xf32>
    %167 = arith.addf %166, %10 : vector<1x16xf32>
    %c0_79 = arith.constant 0 : index
    %c0_80 = arith.constant 0 : index
    %168 = vector.load %arg5[%c0_79, %c0_80] : memref<32x16xf32, #tpu.memory_space<vmem>>, vector<32x16xf32>
    %cst_81 = arith.constant dense<0.000000e+00> : vector<1x16xf32>
    %169 = tpu.matmul %146, %168, %cst_81 {dimension_numbers = #tpu.dot_dimension_numbers<[1], [0], [0], [1], [0, 0, 1, 1], [], []>} : vector<1x32xf32>, vector<32x16xf32>, vector<1x16xf32> -> vector<1x16xf32>
    %170 = arith.addf %169, %11 : vector<1x16xf32>
    %cst_82 = arith.constant dense<0.000000e+00> : vector<1xf32>
    %171 = vector.multi_reduction <add>, %170, %cst_82 [1] : vector<1x16xf32> to vector<1xf32>
    %172 = vector.shape_cast %171 : vector<1xf32> to vector<1x1xf32>
    %cst_83 = arith.constant 1.600000e+01 : f32
    %173 = vector.broadcast %cst_83 : f32 to vector<1x1xf32>
    %174 = arith.divf %172, %173 : vector<1x1xf32>
    %175 = vector.broadcast %174 : vector<1x1xf32> to vector<1x16xf32>
    %176 = arith.subf %170, %175 : vector<1x16xf32>
    %177 = arith.mulf %176, %176 : vector<1x16xf32>
    %cst_84 = arith.constant dense<0.000000e+00> : vector<1xf32>
    %178 = vector.multi_reduction <add>, %177, %cst_84 [1] : vector<1x16xf32> to vector<1xf32>
    %179 = vector.shape_cast %178 : vector<1xf32> to vector<1x1xf32>
    %cst_85 = arith.constant 1.600000e+01 : f32
    %180 = vector.broadcast %cst_85 : f32 to vector<1x1xf32>
    %181 = arith.divf %179, %180 : vector<1x1xf32>
    %cst_86 = arith.constant 9.99999974E-6 : f32
    %182 = vector.broadcast %cst_86 : f32 to vector<1x1xf32>
    %183 = arith.addf %181, %182 : vector<1x1xf32>
    %184 = math.rsqrt %183 : vector<1x1xf32>
    %185 = vector.broadcast %184 : vector<1x1xf32> to vector<1x16xf32>
    %186 = arith.mulf %176, %185 : vector<1x16xf32>
    %187 = arith.mulf %186, %12 : vector<1x16xf32>
    %188 = arith.addf %187, %13 : vector<1x16xf32>
    %189 = arith.maximumf %167, %188 : vector<1x16xf32>
    %190 = arith.subf %167, %189 : vector<1x16xf32>
    %191 = math.exp %190 : vector<1x16xf32>
    %192 = arith.subf %188, %189 : vector<1x16xf32>
    %193 = math.exp %192 : vector<1x16xf32>
    %194 = arith.addf %191, %193 : vector<1x16xf32>
    %cst_87 = arith.constant 1.000000e+00 : f32
    %195 = vector.broadcast %cst_87 : f32 to vector<1x16xf32>
    %196 = arith.divf %195, %194 : vector<1x16xf32>
    %197 = arith.mulf %191, %196 : vector<1x16xf32>
    %198 = arith.mulf %193, %196 : vector<1x16xf32>
    %199 = vector.broadcast %197 : vector<1x16xf32> to vector<64x16xf32>
    %200 = arith.mulf %110, %199 : vector<64x16xf32>
    %201 = vector.broadcast %198 : vector<1x16xf32> to vector<64x16xf32>
    %202 = arith.mulf %116, %201 : vector<64x16xf32>
    %203 = arith.addf %200, %202 : vector<64x16xf32>
    %cst_88 = arith.constant dense<0.000000e+00> : vector<64xf32>
    %204 = vector.multi_reduction <add>, %203, %cst_88 [1] : vector<64x16xf32> to vector<64xf32>
    %205 = vector.shape_cast %204 : vector<64xf32> to vector<64x1xf32>
    %cst_89 = arith.constant 6.250000e-02 : f32
    %206 = vector.broadcast %cst_89 : f32 to vector<64x1xf32>
    %207 = arith.mulf %205, %206 : vector<64x1xf32>
    %208 = vector.broadcast %207 : vector<64x1xf32> to vector<64x16xf32>
    %209 = arith.subf %203, %208 : vector<64x16xf32>
    %210 = arith.mulf %209, %209 : vector<64x16xf32>
    %cst_90 = arith.constant dense<0.000000e+00> : vector<64xf32>
    %211 = vector.multi_reduction <add>, %210, %cst_90 [1] : vector<64x16xf32> to vector<64xf32>
    %212 = vector.shape_cast %211 : vector<64xf32> to vector<64x1xf32>
    %cst_91 = arith.constant 6.250000e-02 : f32
    %213 = vector.broadcast %cst_91 : f32 to vector<64x1xf32>
    %214 = arith.mulf %212, %213 : vector<64x1xf32>
    %cst_92 = arith.constant 9.99999974E-6 : f32
    %215 = vector.broadcast %cst_92 : f32 to vector<64x1xf32>
    %216 = arith.addf %214, %215 : vector<64x1xf32>
    %217 = math.rsqrt %216 : vector<64x1xf32>
    %218 = vector.broadcast %217 : vector<64x1xf32> to vector<64x16xf32>
    %219 = arith.mulf %209, %218 : vector<64x16xf32>
    %220 = vector.broadcast %14 : vector<1x16xf32> to vector<64x16xf32>
    %221 = arith.mulf %219, %220 : vector<64x16xf32>
    %222 = vector.broadcast %15 : vector<1x16xf32> to vector<64x16xf32>
    %223 = arith.addf %221, %222 : vector<64x16xf32>
    %c0_93 = arith.constant 0 : index
    %c0_94 = arith.constant 0 : index
    %c0_95 = arith.constant 0 : index
    %224 = vector.load %arg8[%c0_93, %c0_94, %c0_95] : memref<1x64x16xf32, #tpu.memory_space<vmem>>, vector<1x64x16xf32>
    %225 = vector.shape_cast %224 : vector<1x64x16xf32> to vector<64x16xf32>
    %226 = vector.shape_cast %223 : vector<64x16xf32> to vector<1x64x16xf32>
    tpu.vector_store %arg8[%c0_93, %c0_94, %c0_95], %226 {strides = array<i32>} : memref<1x64x16xf32, #tpu.memory_space<vmem>>, vector<1x64x16xf32>,
    return
  }
  func.func @transform_0(%arg0: i32) -> (i32, i32, i32, i32) {
    %c0_i32 = arith.constant 0 : i32
    %c0_i32_0 = arith.constant 0 : i32
    %c0_i32_1 = arith.constant 0 : i32
    %c0_i32_2 = arith.constant 0 : i32
    return %arg0, %c0_i32, %c0_i32_0, %c0_i32_1 : i32, i32, i32, i32
  }
  func.func @transform_1(%arg0: i32) -> (i32, i32, i32) {
    %c0_i32 = arith.constant 0 : i32
    %c0_i32_0 = arith.constant 0 : i32
    %c0_i32_1 = arith.constant 0 : i32
    %c0_i32_2 = arith.constant 0 : i32
    return %c0_i32, %c0_i32_0, %c0_i32_1 : i32, i32, i32
  }
  func.func @transform_2(%arg0: i32) -> (i32, i32) {
    %c0_i32 = arith.constant 0 : i32
    %c0_i32_0 = arith.constant 0 : i32
    %c0_i32_1 = arith.constant 0 : i32
    return %c0_i32, %c0_i32_0 : i32, i32
  }
  func.func @transform_3(%arg0: i32) -> (i32, i32) {
    %c0_i32 = arith.constant 0 : i32
    %c0_i32_0 = arith.constant 0 : i32
    %c0_i32_1 = arith.constant 0 : i32
    return %c0_i32, %c0_i32_0 : i32, i32
  }
  func.func @transform_4(%arg0: i32) -> (i32, i32) {
    %c0_i32 = arith.constant 0 : i32
    %c0_i32_0 = arith.constant 0 : i32
    %c0_i32_1 = arith.constant 0 : i32
    return %c0_i32, %c0_i32_0 : i32, i32
  }
  func.func @transform_5(%arg0: i32) -> (i32, i32) {
    %c0_i32 = arith.constant 0 : i32
    %c0_i32_0 = arith.constant 0 : i32
    %c0_i32_1 = arith.constant 0 : i32
    return %c0_i32, %c0_i32_0 : i32, i32
  }
  func.func @transform_6(%arg0: i32) -> (i32, i32) {
    %c0_i32 = arith.constant 0 : i32
    %c0_i32_0 = arith.constant 0 : i32
    %c0_i32_1 = arith.constant 0 : i32
    return %c0_i32, %c0_i32_0 : i32, i32
  }
  func.func @transform_7(%arg0: i32) -> (i32, i32, i32) {
    %c0_i32 = arith.constant 0 : i32
    %c0_i32_0 = arith.constant 0 : i32
    %c0_i32_1 = arith.constant 0 : i32
    return %arg0, %c0_i32, %c0_i32_0 : i32, i32, i32
  }
}

</mosaic_0001>

<llo_original>
// kernel: sgap_forward.1
$region0: #{sgap_forward.1}
  #allocation0 [shape = 'u32[]', space=smem, size = 0x4, offset = 0x4, fixed_abs, tag = 'smem constant byte address 0x4 - core index']
  #allocation1 [shape = 'u32[72,128]{1,0:T(1,128)}', space=vmem, size = 0x9000, scoped, tag = 'internal scratch']
  #allocation2 [shape = 'f32[10,10,8]{2,1,0:T(8,128)}', space=vmem, size = 0x14000, scoped, tag = 'scratch operand']
  #allocation3 [shape = 'f32[10,10,16]{2,1,0:T(8,128)}', space=vmem, size = 0x14000, scoped, tag = 'scratch operand']
  %s0 = inlined_call_operand.vmem [shape: f32[2,8,8,8], index: 0, kind: input, shape index: {}]
  %s1 = inlined_call_operand.vmem [shape: f32[9,8,16], index: 1, kind: input, shape index: {}]
  %s2 = inlined_call_operand.vmem [shape: f32[32,32], index: 2, kind: input, shape index: {}]
  %s3 = inlined_call_operand.vmem [shape: f32[32,16], index: 3, kind: input, shape index: {}]
  %s4 = inlined_call_operand.vmem [shape: f32[32,16], index: 4, kind: input, shape index: {}]
  %s5 = inlined_call_operand.vmem [shape: f32[3,32], index: 5, kind: input, shape index: {}]
  %s6 = inlined_call_operand.vmem [shape: f32[9,16], index: 6, kind: input, shape index: {}]
  %s7 = inlined_call_operand.vmem [shape: f32[2,64,16], index: 7, kind: output, shape index: {}]
  %s8 = sld [smem:[#allocation0]]
  $region61: #{sgap_forward.1} parent=0
    _
  %s10 = ssub.s32 1, %s8
  %s11 = scalar_select 0, %s10, %s8
  loop: start=0, step=1, limit=4
  $region2: #{sgap_forward.1} parent=0 // loop_pre_header
    _
  $region3: #{sgap_forward.1} parent=0 // loop_header
    %s13 = sphi 0, %s17
    %p14 = scmp.ge.s32.totalorder %s13, 4
    %s23 = sphi 0, %s25
    %s26 = sphi 0, %s23
    %s27 = sphi 0, %s26
    %s43 = sphi 0, %s27
    %s47 = sphi 0, %s47
    %s49 = sphi 0, %s47
    %s50 = sphi 0, %s49
    %s64 = sphi 0, %s50
    %s68 = sphi 0, %s68
    %s70 = sphi 0, %s68
    %s71 = sphi 0, %s70
    %s85 = sphi 0, %s71
    %s89 = sphi 0, %s89
    %s91 = sphi 0, %s89
    %s92 = sphi 0, %s91
    %s106 = sphi 0, %s92
    %s110 = sphi 0, %s110
    %s112 = sphi 0, %s110
    %s113 = sphi 0, %s112
    %s127 = sphi 0, %s113
    %s131 = sphi 0, %s131
    %s133 = sphi 0, %s131
    %s134 = sphi 0, %s133
    %s148 = sphi 0, %s134
    %s152 = sphi 0, %s152
    %s154 = sphi 0, %s152
    %s155 = sphi 0, %s154
    %s169 = sphi 0, %s155
    %s175 = sphi 0, %s177
    %s178 = sphi 0, %s175
    %s179 = sphi 0, %s178
    %s195 = sphi 0, %s179
  $region4: #{sgap_forward.1} parent=0 // loop_header_branch
    %16 = sbr.rel (%p14) target = $region8
  $region5: #{sgap_forward.1} parent=0 // loop_body
    %s18 = ssub.s32 %s13, 1
    %s19 = ssub.s32 %s13, 2
    %s20 = sadd.s32 %s13, 1
    %s21 = ssub.s32 %s13, %s20
    %p22 = scmp.eq.s32.totalorder %s21, 0
    %s24 = sadd.s32 %s23, 1
    %s25 = scalar_select %p22, %s23, %s24
    %p28 = pneg %p22
    %p29 = scmp.eq.s32.totalorder %s13, 1
    %p30 = por %p28, %p29
    %p31 = scmp.ne.s32.totalorder %s23, %s26
    %p32 = scmp.eq.s32.totalorder %s13, 0
    %p33 = por %p31, %p32
    %p34 = scmp.ne.s32.totalorder %s23, %s26
    %p35 = scmp.eq.s32.totalorder %s18, 1
    %p36 = por %p34, %p35
    %p37 = scmp.ne.s32.totalorder %s26, %s27
    %p38 = scmp.eq.s32.totalorder %s18, 0
    %p39 = por %p37, %p38
    %p40 = scmp.ne.s32.totalorder %s26, %s27
    %p41 = scmp.eq.s32.totalorder %s19, 1
    %p42 = por %p40, %p41
    %p44 = scmp.ne.s32.totalorder %s27, %s43
    %p45 = scmp.eq.s32.totalorder %s19, 0
    %p46 = por %p44, %p45
    %s48 = sadd.s32 %s47, 1
    %p51 = scmp.eq.s32.totalorder %s13, 1
    %p52 = scmp.ne.s32.totalorder %s47, %s49
    %p53 = scmp.eq.s32.totalorder %s13, 0
    %p54 = por %p52, %p53
    %p55 = scmp.ne.s32.totalorder %s47, %s49
    %p56 = scmp.eq.s32.totalorder %s18, 1
    %p57 = por %p55, %p56
    %p58 = scmp.ne.s32.totalorder %s49, %s50
    %p59 = scmp.eq.s32.totalorder %s18, 0
    %p60 = por %p58, %p59
    %p61 = scmp.ne.s32.totalorder %s49, %s50
    %p62 = scmp.eq.s32.totalorder %s19, 1
    %p63 = por %p61, %p62
    %p65 = scmp.ne.s32.totalorder %s50, %s64
    %p66 = scmp.eq.s32.totalorder %s19, 0
    %p67 = por %p65, %p66
    %s69 = sadd.s32 %s68, 1
    %p72 = scmp.eq.s32.totalorder %s13, 1
    %p73 = scmp.ne.s32.totalorder %s68, %s70
    %p74 = scmp.eq.s32.totalorder %s13, 0
    %p75 = por %p73, %p74
    %p76 = scmp.ne.s32.totalorder %s68, %s70
    %p77 = scmp.eq.s32.totalorder %s18, 1
    %p78 = por %p76, %p77
    %p79 = scmp.ne.s32.totalorder %s70, %s71
    %p80 = scmp.eq.s32.totalorder %s18, 0
    %p81 = por %p79, %p80
    %p82 = scmp.ne.s32.totalorder %s70, %s71
    %p83 = scmp.eq.s32.totalorder %s19, 1
    %p84 = por %p82, %p83
    %p86 = scmp.ne.s32.totalorder %s71, %s85
    %p87 = scmp.eq.s32.totalorder %s19, 0
    %p88 = por %p86, %p87
    %s90 = sadd.s32 %s89, 1
    %p93 = scmp.eq.s32.totalorder %s13, 1
    %p94 = scmp.ne.s32.totalorder %s89, %s91
    %p95 = scmp.eq.s32.totalorder %s13, 0
    %p96 = por %p94, %p95
    %p97 = scmp.ne.s32.totalorder %s89, %s91
    %p98 = scmp.eq.s32.totalorder %s18, 1
    %p99 = por %p97, %p98
    %p100 = scmp.ne.s32.totalorder %s91, %s92
    %p101 = scmp.eq.s32.totalorder %s18, 0
    %p102 = por %p100, %p101
    %p103 = scmp.ne.s32.totalorder %s91, %s92
    %p104 = scmp.eq.s32.totalorder %s19, 1
    %p105 = por %p103, %p104
    %p107 = scmp.ne.s32.totalorder %s92, %s106
    %p108 = scmp.eq.s32.totalorder %s19, 0
    %p109 = por %p107, %p108
    %s111 = sadd.s32 %s110, 1
    %p114 = scmp.eq.s32.totalorder %s13, 1
    %p115 = scmp.ne.s32.totalorder %s110, %s112
    %p116 = scmp.eq.s32.totalorder %s13, 0
    %p117 = por %p115, %p116
    %p118 = scmp.ne.s32.totalorder %s110, %s112
    %p119 = scmp.eq.s32.totalorder %s18, 1
    %p120 = por %p118, %p119
    %p121 = scmp.ne.s32.totalorder %s112, %s113
    %p122 = scmp.eq.s32.totalorder %s18, 0
    %p123 = por %p121, %p122
    %p124 = scmp.ne.s32.totalorder %s112, %s113
    %p125 = scmp.eq.s32.totalorder %s19, 1
    %p126 = por %p124, %p125
    %p128 = scmp.ne.s32.totalorder %s113, %s127
    %p129 = scmp.eq.s32.totalorder %s19, 0
    %p130 = por %p128, %p129
    %s132 = sadd.s32 %s131, 1
    %p135 = scmp.eq.s32.totalorder %s13, 1
    %p136 = scmp.ne.s32.totalorder %s131, %s133
    %p137 = scmp.eq.s32.totalorder %s13, 0
    %p138 = por %p136, %p137
    %p139 = scmp.ne.s32.totalorder %s131, %s133
    %p140 = scmp.eq.s32.totalorder %s18, 1
    %p141 = por %p139, %p140
    %p142 = scmp.ne.s32.totalorder %s133, %s134
    %p143 = scmp.eq.s32.totalorder %s18, 0
    %p144 = por %p142, %p143
    %p145 = scmp.ne.s32.totalorder %s133, %s134
    %p146 = scmp.eq.s32.totalorder %s19, 1
    %p147 = por %p145, %p146
    %p149 = scmp.ne.s32.totalorder %s134, %s148
    %p150 = scmp.eq.s32.totalorder %s19, 0
    %p151 = por %p149, %p150
    %s153 = sadd.s32 %s152, 1
    %p156 = scmp.eq.s32.totalorder %s13, 1
    %p157 = scmp.ne.s32.totalorder %s152, %s154
    %p158 = scmp.eq.s32.totalorder %s13, 0
    %p159 = por %p157, %p158
    %p160 = scmp.ne.s32.totalorder %s152, %s154
    %p161 = scmp.eq.s32.totalorder %s18, 1
    %p162 = por %p160, %p161
    %p163 = scmp.ne.s32.totalorder %s154, %s155
    %p164 = scmp.eq.s32.totalorder %s18, 0
    %p165 = por %p163, %p164
    %p166 = scmp.ne.s32.totalorder %s154, %s155
    %p167 = scmp.eq.s32.totalorder %s19, 1
    %p168 = por %p166, %p167
    %p170 = scmp.ne.s32.totalorder %s155, %s169
    %p171 = scmp.eq.s32.totalorder %s19, 0
    %p172 = por %p170, %p171
    %s173 = ssub.s32 %s13, %s20
    %p174 = scmp.eq.s32.totalorder %s173, 0
    %s176 = sadd.s32 %s175, 1
    %s177 = scalar_select %p174, %s175, %s176
    %p180 = pneg %p174
    %p181 = scmp.eq.s32.totalorder %s13, 1
    %p182 = por %p180, %p181
    %p183 = scmp.ne.s32.totalorder %s175, %s178
    %p184 = scmp.eq.s32.totalorder %s13, 0
    %p185 = por %p183, %p184
    %p186 = scmp.ne.s32.totalorder %s175, %s178
    %p187 = scmp.eq.s32.totalorder %s18, 1
    %p188 = por %p186, %p187
    %p189 = scmp.ne.s32.totalorder %s178, %s179
    %p190 = scmp.eq.s32.totalorder %s18, 0
    %p191 = por %p189, %p190
    %p192 = scmp.ne.s32.totalorder %s178, %s179
    %p193 = scmp.eq.s32.totalorder %s19, 1
    %p194 = por %p192, %p193
    %p196 = scmp.ne.s32.totalorder %s179, %s195
    %p197 = scmp.eq.s32.totalorder %s19, 0
    %p198 = por %p196, %p197
    %p199 = scmp.le.s32.totalorder 1, %s13
    %p200 = scmp.lt.s32.totalorder %s13, 3
    %p201 = pnand %p199, %p200
    %p202 = pneg %p201
    // Predicated region
    $region9: #{sgap_forward.1} parent=5 // pred_check
      _
    $region10: #{sgap_forward.1} parent=5 // pred_check_branch
      %204 = sbr.rel (%p201) target = $region12
    $region11: #{sgap_forward.1} parent=5 // pred_region
      %s205 = ssub.s32 %s13, 1
      // Predicated region
      $region13: #{sgap_forward.1} parent=11 // pred_check
        %p206 = pneg %p60
      $region14: #{sgap_forward.1} parent=11 // pred_check_branch
        %208 = sbr.rel (%p206) target = $region16
      $region15: #{sgap_forward.1} parent=11 // pred_region
        _
      $region16: #{sgap_forward.1} parent=11 // pred_fallthru
        _
      // Predicated region
      $region17: #{sgap_forward.1} parent=11 // pred_check
        %p209 = pneg %p81
      $region18: #{sgap_forward.1} parent=11 // pred_check_branch
        %211 = sbr.rel (%p209) target = $region20
      $region19: #{sgap_forward.1} parent=11 // pred_region
        _
      $region20: #{sgap_forward.1} parent=11 // pred_fallthru
        _
      // Predicated region
      $region21: #{sgap_forward.1} parent=11 // pred_check
        %p212 = pneg %p102
      $region22: #{sgap_forward.1} parent=11 // pred_check_branch
        %214 = sbr.rel (%p212) target = $region24
      $region23: #{sgap_forward.1} parent=11 // pred_region
        _
      $region24: #{sgap_forward.1} parent=11 // pred_fallthru
        _
      // Predicated region
      $region25: #{sgap_forward.1} parent=11 // pred_check
        %p215 = pneg %p123
      $region26: #{sgap_forward.1} parent=11 // pred_check_branch
        %217 = sbr.rel (%p215) target = $region28
      $region27: #{sgap_forward.1} parent=11 // pred_region
        _
      $region28: #{sgap_forward.1} parent=11 // pred_fallthru
        _
      // Predicated region
      $region29: #{sgap_forward.1} parent=11 // pred_check
        %p218 = pneg %p144
      $region30: #{sgap_forward.1} parent=11 // pred_check_branch
        %220 = sbr.rel (%p218) target = $region32
      $region31: #{sgap_forward.1} parent=11 // pred_region
        _
      $region32: #{sgap_forward.1} parent=11 // pred_fallthru
        _
      // Predicated region
      $region33: #{sgap_forward.1} parent=11 // pred_check
        %p221 = pneg %p165
      $region34: #{sgap_forward.1} parent=11 // pred_check_branch
        %223 = sbr.rel (%p221) target = $region36
      $region35: #{sgap_forward.1} parent=11 // pred_region
        _
      $region36: #{sgap_forward.1} parent=11 // pred_fallthru
        _
    $region12: #{sgap_forward.1} parent=5 // pred_fallthru
      _
    %p224 = scmp.lt.s32.totalorder %s13, 2
    // Predicated region
    $region37: #{sgap_forward.1} parent=5 // pred_check
      %p225 = pneg %p224
    $region38: #{sgap_forward.1} parent=5 // pred_check_branch
      %227 = sbr.rel (%p225) target = $region40
    $region39: #{sgap_forward.1} parent=5 // pred_region
      // Predicated region
      $region41: #{sgap_forward.1} parent=39 // pred_check
        %p228 = pneg %p33
      $region42: #{sgap_forward.1} parent=39 // pred_check_branch
        %230 = sbr.rel (%p228) target = $region44
      $region43: #{sgap_forward.1} parent=39 // pred_region
        %p231 = scmp.lt.s32.totalorder %s13, 1
        %s232 = scalar_select %p231, %s13, 1
        %s233 = smul.addr %s232, 8
        %s234 = smul.addr %s233, 8
        %s235 = scalar_lea.vmem %s0, %s234
      $region44: #{sgap_forward.1} parent=39 // pred_fallthru
        _
    $region40: #{sgap_forward.1} parent=5 // pred_fallthru
      _
    %p236 = scmp.le.s32.totalorder 1, %s13
    %p237 = scmp.lt.s32.totalorder %s13, 3
    %p238 = pnand %p236, %p237
    %p239 = pneg %p238
    // Predicated region
    $region45: #{sgap_forward.1} parent=5 // pred_check
      _
    $region46: #{sgap_forward.1} parent=5 // pred_check_branch
      %241 = sbr.rel (%p238) target = $region48
    $region47: #{sgap_forward.1} parent=5 // pred_region
      %s242 = ssub.s32 %s13, 1
      %p243 = scmp.lt.s32.totalorder %s18, 1
      %s244 = scalar_select %p243, %s18, 1
      %s245 = smul.addr %s244, 8
      %s246 = smul.addr %s245, 8
      %s247 = scalar_lea.vmem %s0, %s246
      %p248 = pneg %p39
      %p249 = pneg %p36
      %p250 = pneg %p60
      %p251 = pneg %p57
      %p252 = pneg %p81
      %p253 = pneg %p78
      %p254 = pneg %p102
      %p255 = pneg %p99
      %p256 = pneg %p123
      %p257 = pneg %p120
      %p258 = pneg %p144
      %p259 = pneg %p141
      %p260 = pneg %p165
      %p261 = pneg %p162
      %p262 = pneg %p191
      %p263 = pneg %p188
      %p264 = scmp.lt.s32.totalorder %s18, 1
      %s265 = scalar_select %p264, %s18, 1
      %s266 = smul.addr %s265, 8
      %s267 = smul.addr %s266, 8
      %s268 = scalar_lea.vmem %s7, %s267
      %p269 = scmp.lt.s32.totalorder %s18, 1
      %s270 = scalar_select %p269, %s18, 1
      %s271 = smul.addr %s270, 8
      %s272 = smul.addr %s271, 8
      %s273 = scalar_lea.vmem %s0, %s272
      %p274 = scmp.lt.s32.totalorder %s18, 1
      %s275 = scalar_select %p274, %s18, 1
      %s276 = smul.addr %s275, 8
      %s277 = smul.addr %s276, 8
      %s278 = scalar_lea.vmem %s7, %s277
      %v279 = vld [vmem:[%s273] sm:$0xff]
      %v280 = vld [vmem:[%s273 + $0x8] sm:$0xff]
      %v281 = vld [vmem:[%s273 + $0x10] sm:$0xff]
      %v282 = vld [vmem:[%s273 + $0x18] sm:$0xff]
      %v283 = vld [vmem:[%s273 + $0x20] sm:$0xff]
      %v284 = vld [vmem:[%s273 + $0x28] sm:$0xff]
      %v285 = vld [vmem:[%s273 + $0x30] sm:$0xff]
      %v286 = vld [vmem:[%s273 + $0x38] sm:$0xff]
      %v287 = vld [vmem:[%s5] sm:$0x7]
      %v288 = vld [vmem:[%s6] sm:$0xff]
      %v289 = vld [vmem:[%s6 + $0x8] sm:$0x1]
      %vm290 = vcmask 64512
      %291 = vst.msk [vmem:[#allocation2] sm:$0xff] %vm290, 0.0
      %vm292 = vcmask 58368
      %293 = vst.msk [vmem:[#allocation2 + $0x8] sm:$0x3] %vm292, 0.0
      %s294 = scalar_lea.vmem [#allocation2], 144
      %295 = vst.msk [vmem:[%s294] sm:$0xff] %vm290, 0.0
      %296 = vst.msk [vmem:[%s294 + $0x8] sm:$0x3] %vm292, 0.0
      %vm297 = vcmask 57344
      %298 = vst.msk [vmem:[#allocation2] sm:$0x1] %vm297, 0.0
      %299 = vst.msk [vmem:[#allocation2 + $0x10] sm:$0x1] %vm297, 0.0
      %300 = vst.msk [vmem:[#allocation2 + $0x20] sm:$0x1] %vm297, 0.0
      %301 = vst.msk [vmem:[#allocation2 + $0x30] sm:$0x1] %vm297, 0.0
      %302 = vst.msk [vmem:[#allocation2 + $0x40] sm:$0x1] %vm297, 0.0
      %303 = vst.msk [vmem:[#allocation2 + $0x50] sm:$0x1] %vm297, 0.0
      %304 = vst.msk [vmem:[#allocation2 + $0x60] sm:$0x1] %vm297, 0.0
      %305 = vst.msk [vmem:[#allocation2 + $0x70] sm:$0x1] %vm297, 0.0
      %306 = vst.msk [vmem:[#allocation2 + $0x80] sm:$0x1] %vm297, 0.0
      %307 = vst.msk [vmem:[#allocation2 + $0x90] sm:$0x1] %vm297, 0.0
      %308 = vst.msk [vmem:[#allocation2 + $0x9] sm:$0x1] %vm297, 0.0
      %309 = vst.msk [vmem:[#allocation2 + $0x19] sm:$0x1] %vm297, 0.0
      %310 = vst.msk [vmem:[#allocation2 + $0x29] sm:$0x1] %vm297, 0.0
      %311 = vst.msk [vmem:[#allocation2 + $0x39] sm:$0x1] %vm297, 0.0
      %312 = vst.msk [vmem:[#allocation2 + $0x49] sm:$0x1] %vm297, 0.0
      %313 = vst.msk [vmem:[#allocation2 + $0x59] sm:$0x1] %vm297, 0.0
      %314 = vst.msk [vmem:[#allocation2 + $0x69] sm:$0x1] %vm297, 0.0
      %315 = vst.msk [vmem:[#allocation2 + $0x79] sm:$0x1] %vm297, 0.0
      %316 = vst.msk [vmem:[#allocation2 + $0x89] sm:$0x1] %vm297, 0.0
      %317 = vst.msk [vmem:[#allocation2 + $0x99] sm:$0x1] %vm297, 0.0
      %s318 = scalar_lea.vmem [#allocation2], 16
      %319 = vst.msk [vmem:[%s318 + $0x1] sm:$0xff] %vm290, %v279
      %320 = vst.msk [vmem:[%s318 + $0x11] sm:$0xff] %vm290, %v280
      %321 = vst.msk [vmem:[%s318 + $0x21] sm:$0xff] %vm290, %v281
      %322 = vst.msk [vmem:[%s318 + $0x31] sm:$0xff] %vm290, %v282
      %323 = vst.msk [vmem:[%s318 + $0x41] sm:$0xff] %vm290, %v283
      %324 = vst.msk [vmem:[%s318 + $0x51] sm:$0xff] %vm290, %v284
      %325 = vst.msk [vmem:[%s318 + $0x61] sm:$0xff] %vm290, %v285
      %326 = vst.msk [vmem:[%s318 + $0x71] sm:$0xff] %vm290, %v286
      %v327 = vld [vmem:[#allocation2] sm:$0xff]
      %v328 = vld [vmem:[#allocation2 + $0x8] sm:$0x3]
      %v329 = vld [vmem:[#allocation2 + $0x10] sm:$0xff]
      %v330 = vld [vmem:[#allocation2 + $0x18] sm:$0x3]
      %v331 = vld [vmem:[#allocation2 + $0x20] sm:$0xff]
      %v332 = vld [vmem:[#allocation2 + $0x28] sm:$0x3]
      %v333 = vld [vmem:[#allocation2 + $0x30] sm:$0xff]
      %v334 = vld [vmem:[#allocation2 + $0x38] sm:$0x3]
      %v335 = vld [vmem:[#allocation2 + $0x40] sm:$0xff]
      %v336 = vld [vmem:[#allocation2 + $0x48] sm:$0x3]
      %v337 = vld [vmem:[#allocation2 + $0x50] sm:$0xff]
      %v338 = vld [vmem:[#allocation2 + $0x58] sm:$0x3]
      %v339 = vld [vmem:[#allocation2 + $0x60] sm:$0xff]
      %v340 = vld [vmem:[#allocation2 + $0x68] sm:$0x3]
      %v341 = vld [vmem:[#allocation2 + $0x70] sm:$0xff]
      %v342 = vld [vmem:[#allocation2 + $0x78] sm:$0x3]
      %v343 = vld [vmem:[#allocation2 + $0x80] sm:$0xff]
      %v344 = vld [vmem:[#allocation2 + $0x88] sm:$0x3]
      %v345 = vld [vmem:[#allocation2 + $0x90] sm:$0xff]
      %v346 = vld [vmem:[#allocation2 + $0x98] sm:$0x3]
      %v347 = vld [vmem:[%s1] sm:$0xff]
      %v348 = vld [vmem:[%s1 + $0x8] sm:$0xff]
      %v349 = vld [vmem:[%s1 + $0x10] sm:$0xff]
      %v350 = vld [vmem:[%s1 + $0x18] sm:$0xff]
      %v351 = vld [vmem:[%s1 + $0x20] sm:$0xff]
      %v352 = vld [vmem:[%s1 + $0x28] sm:$0xff]
      %v353 = vld [vmem:[%s1 + $0x30] sm:$0xff]
      %v354 = vld [vmem:[%s1 + $0x38] sm:$0xff]
      %v355 = vld [vmem:[%s1 + $0x40] sm:$0xff]
      %vm372 = vcmask 1046528
      %v373 = vrot.slane %v327, 1
      %v374 = vrot.slane %v328, 1
      %v375 = vsel %vm372, %v373, %v374
      %v376 = vrot.slane %v329, 1
      %v377 = vrot.slane %v330, 1
      %v378 = vsel %vm372, %v376, %v377
      %v379 = vrot.slane %v331, 1
      %v380 = vrot.slane %v332, 1
      %v381 = vsel %vm372, %v379, %v380
      %v382 = vrot.slane %v333, 1
      %v383 = vrot.slane %v334, 1
      %v384 = vsel %vm372, %v382, %v383
      %v385 = vrot.slane %v335, 1
      %v386 = vrot.slane %v336, 1
      %v387 = vsel %vm372, %v385, %v386
      %v388 = vrot.slane %v337, 1
      %v389 = vrot.slane %v338, 1
      %v390 = vsel %vm372, %v388, %v389
      %v391 = vrot.slane %v339, 1
      %v392 = vrot.slane %v340, 1
      %v393 = vsel %vm372, %v391, %v392
      %v394 = vrot.slane %v341, 1
      %v395 = vrot.slane %v342, 1
      %v396 = vsel %vm372, %v394, %v395
      %v397 = vsel %vm290, %v375, 0
      %v399 = vsel %vm290, %v378, 0
      %v401 = vsel %vm290, %v381, 0
      %v403 = vsel %vm290, %v384, 0
      %v405 = vsel %vm290, %v387, 0
      %v407 = vsel %vm290, %v390, 0
      %v409 = vsel %vm290, %v393, 0
      %v411 = vsel %vm290, %v396, 0
      %413 = vmatpush.msra.mxu0 0.0
      %414 = vmatpush.msra.mxu0 0.0
      %415 = vmatpush.msra.mxu0 0.0
      %416 = vmatpush.msra.mxu0 0.0
      %417 = vmatpush.msra.mxu0 0.0
      %418 = vmatpush.msra.mxu0 0.0
      %419 = vmatpush.msra.mxu0 0.0
      %420 = vmatpush.msra.mxu0 0.0
      %421 = vmatpush.msra.mxu0 0.0
      %422 = vmatpush.msra.mxu0 0.0
      %423 = vmatpush.msra.mxu0 0.0
      %424 = vmatpush.msra.mxu0 0.0
      %425 = vmatpush.msra.mxu0 0.0
      %426 = vmatpush.msra.mxu0 0.0
      %427 = vmatpush.msra.mxu0 0.0
      %428 = vmatpush.msra.mxu0 %v348
      %429 = vmatmul.f32.gmra.mxu0 %v397
      %v430 = vpop.f32.mrf.mxu0
      %v431 = vadd.f32 0.0, %v430
      %432 = vmatmul.f32.gmra.mxu0 %v399
      %v433 = vpop.f32.mrf.mxu0
      %v434 = vadd.f32 0.0, %v433
      %435 = vmatmul.f32.gmra.mxu0 %v401
      %v436 = vpop.f32.mrf.mxu0
      %v437 = vadd.f32 0.0, %v436
      %438 = vmatmul.f32.gmra.mxu0 %v403
      %v439 = vpop.f32.mrf.mxu0
      %v440 = vadd.f32 0.0, %v439
      %441 = vmatmul.f32.gmra.mxu0 %v405
      %v442 = vpop.f32.mrf.mxu0
      %v443 = vadd.f32 0.0, %v442
      %444 = vmatmul.f32.gmra.mxu0 %v407
      %v445 = vpop.f32.mrf.mxu0
      %v446 = vadd.f32 0.0, %v445
      %447 = vmatmul.f32.gmra.mxu0 %v409
      %v448 = vpop.f32.mrf.mxu0
      %v449 = vadd.f32 0.0, %v448
      %450 = vmatmul.f32.gmra.mxu0 %v411
      %v451 = vpop.f32.mrf.mxu0
      %v452 = vadd.f32 0.0, %v451
      %453 = vdwg.mxu0
      %v454 = vsel %vm290, %v327, 0
      %v456 = vsel %vm290, %v329, 0
      %v458 = vsel %vm290, %v331, 0
      %v460 = vsel %vm290, %v333, 0
      %v462 = vsel %vm290, %v335, 0
      %v464 = vsel %vm290, %v337, 0
      %v466 = vsel %vm290, %v339, 0
      %v468 = vsel %vm290, %v341, 0
      %470 = vmatpush.msra.mxu0 0.0
      %471 = vmatpush.msra.mxu0 0.0
      %472 = vmatpush.msra.mxu0 0.0
      %473 = vmatpush.msra.mxu0 0.0
      %474 = vmatpush.msra.mxu0 0.0
      %475 = vmatpush.msra.mxu0 0.0
      %476 = vmatpush.msra.mxu0 0.0
      %477 = vmatpush.msra.mxu0 0.0
      %478 = vmatpush.msra.mxu0 0.0
      %479 = vmatpush.msra.mxu0 0.0
      %480 = vmatpush.msra.mxu0 0.0
      %481 = vmatpush.msra.mxu0 0.0
      %482 = vmatpush.msra.mxu0 0.0
      %483 = vmatpush.msra.mxu0 0.0
      %484 = vmatpush.msra.mxu0 0.0
      %485 = vmatpush.msra.mxu0 %v347
      %486 = vmatmul.f32.gmra.mxu0 %v454
      %v487 = vpop.f32.mrf.mxu0
      %v488 = vadd.f32 %v431, %v487
      %489 = vmatmul.f32.gmra.mxu0 %v456
      %v490 = vpop.f32.mrf.mxu0
      %v491 = vadd.f32 %v434, %v490
      %492 = vmatmul.f32.gmra.mxu0 %v458
      %v493 = vpop.f32.mrf.mxu0
      %v494 = vadd.f32 %v437, %v493
      %495 = vmatmul.f32.gmra.mxu0 %v460
      %v496 = vpop.f32.mrf.mxu0
      %v497 = vadd.f32 %v440, %v496
      %498 = vmatmul.f32.gmra.mxu0 %v462
      %v499 = vpop.f32.mrf.mxu0
      %v500 = vadd.f32 %v443, %v499
      %501 = vmatmul.f32.gmra.mxu0 %v464
      %v502 = vpop.f32.mrf.mxu0
      %v503 = vadd.f32 %v446, %v502
      %504 = vmatmul.f32.gmra.mxu0 %v466
      %v505 = vpop.f32.mrf.mxu0
      %v506 = vadd.f32 %v449, %v505
      %507 = vmatmul.f32.gmra.mxu0 %v468
      %v508 = vpop.f32.mrf.mxu0
      %v509 = vadd.f32 %v452, %v508
      %510 = vdwg.mxu0
      %vm511 = vcmask 1045504
      %v512 = vrot.slane %v327, 2
      %v513 = vrot.slane %v328, 2
      %v514 = vsel %vm511, %v512, %v513
      %v515 = vrot.slane %v329, 2
      %v516 = vrot.slane %v330, 2
      %v517 = vsel %vm511, %v515, %v516
      %v518 = vrot.slane %v331, 2
      %v519 = vrot.slane %v332, 2
      %v520 = vsel %vm511, %v518, %v519
      %v521 = vrot.slane %v333, 2
      %v522 = vrot.slane %v334, 2
      %v523 = vsel %vm511, %v521, %v522
      %v524 = vrot.slane %v335, 2
      %v525 = vrot.slane %v336, 2
      %v526 = vsel %vm511, %v524, %v525
      %v527 = vrot.slane %v337, 2
      %v528 = vrot.slane %v338, 2
      %v529 = vsel %vm511, %v527, %v528
      %v530 = vrot.slane %v339, 2
      %v531 = vrot.slane %v340, 2
      %v532 = vsel %vm511, %v530, %v531
      %v533 = vrot.slane %v341, 2
      %v534 = vrot.slane %v342, 2
      %v535 = vsel %vm511, %v533, %v534
      %v536 = vsel %vm290, %v514, 0
      %v538 = vsel %vm290, %v517, 0
      %v540 = vsel %vm290, %v520, 0
      %v542 = vsel %vm290, %v523, 0
      %v544 = vsel %vm290, %v526, 0
      %v546 = vsel %vm290, %v529, 0
      %v548 = vsel %vm290, %v532, 0
      %v550 = vsel %vm290, %v535, 0
      %552 = vmatpush.msra.mxu0 0.0
      %553 = vmatpush.msra.mxu0 0.0
      %554 = vmatpush.msra.mxu0 0.0
      %555 = vmatpush.msra.mxu0 0.0
      %556 = vmatpush.msra.mxu0 0.0
      %557 = vmatpush.msra.mxu0 0.0
      %558 = vmatpush.msra.mxu0 0.0
      %559 = vmatpush.msra.mxu0 0.0
      %560 = vmatpush.msra.mxu0 0.0
      %561 = vmatpush.msra.mxu0 0.0
      %562 = vmatpush.msra.mxu0 0.0
      %563 = vmatpush.msra.mxu0 0.0
      %564 = vmatpush.msra.mxu0 0.0
      %565 = vmatpush.msra.mxu0 0.0
      %566 = vmatpush.msra.mxu0 0.0
      %567 = vmatpush.msra.mxu0 %v349
      %568 = vmatmul.f32.gmra.mxu0 %v536
      %v569 = vpop.f32.mrf.mxu0
      %v570 = vadd.f32 0.0, %v569
      %571 = vmatmul.f32.gmra.mxu0 %v538
      %v572 = vpop.f32.mrf.mxu0
      %v573 = vadd.f32 0.0, %v572
      %574 = vmatmul.f32.gmra.mxu0 %v540
      %v575 = vpop.f32.mrf.mxu0
      %v576 = vadd.f32 0.0, %v575
      %577 = vmatmul.f32.gmra.mxu0 %v542
      %v578 = vpop.f32.mrf.mxu0
      %v579 = vadd.f32 0.0, %v578
      %580 = vmatmul.f32.gmra.mxu0 %v544
      %v581 = vpop.f32.mrf.mxu0
      %v582 = vadd.f32 0.0, %v581
      %583 = vmatmul.f32.gmra.mxu0 %v546
      %v584 = vpop.f32.mrf.mxu0
      %v585 = vadd.f32 0.0, %v584
      %586 = vmatmul.f32.gmra.mxu0 %v548
      %v587 = vpop.f32.mrf.mxu0
      %v588 = vadd.f32 0.0, %v587
      %589 = vmatmul.f32.gmra.mxu0 %v550
      %v590 = vpop.f32.mrf.mxu0
      %v591 = vadd.f32 0.0, %v590
      %592 = vdwg.mxu0
      %v593 = vadd.f32 %v488, %v570
      %v594 = vadd.f32 %v491, %v573
      %v595 = vadd.f32 %v494, %v576
      %v596 = vadd.f32 %v497, %v579
      %v597 = vadd.f32 %v500, %v582
      %v598 = vadd.f32 %v503, %v585
      %v599 = vadd.f32 %v506, %v588
      %v600 = vadd.f32 %v509, %v591
      %v602 = vsel %vm290, %v343, 0
      %604 = vmatpush.msra.mxu0 0.0
      %605 = vmatpush.msra.mxu0 0.0
      %606 = vmatpush.msra.mxu0 0.0
      %607 = vmatpush.msra.mxu0 0.0
      %608 = vmatpush.msra.mxu0 0.0
      %609 = vmatpush.msra.mxu0 0.0
      %610 = vmatpush.msra.mxu0 0.0
      %611 = vmatpush.msra.mxu0 0.0
      %612 = vmatpush.msra.mxu0 0.0
      %613 = vmatpush.msra.mxu0 0.0
      %614 = vmatpush.msra.mxu0 0.0
      %615 = vmatpush.msra.mxu0 0.0
      %616 = vmatpush.msra.mxu0 0.0
      %617 = vmatpush.msra.mxu0 0.0
      %618 = vmatpush.msra.mxu0 0.0
      %619 = vmatpush.msra.mxu0 %v350
      %620 = vmatmul.f32.gmra.mxu0 %v456
      %v621 = vpop.f32.mrf.mxu0
      %v622 = vadd.f32 0.0, %v621
      %623 = vmatmul.f32.gmra.mxu0 %v458
      %v624 = vpop.f32.mrf.mxu0
      %v625 = vadd.f32 0.0, %v624
      %626 = vmatmul.f32.gmra.mxu0 %v460
      %v627 = vpop.f32.mrf.mxu0
      %v628 = vadd.f32 0.0, %v627
      %629 = vmatmul.f32.gmra.mxu0 %v462
      %v630 = vpop.f32.mrf.mxu0
      %v631 = vadd.f32 0.0, %v630
      %632 = vmatmul.f32.gmra.mxu0 %v464
      %v633 = vpop.f32.mrf.mxu0
      %v634 = vadd.f32 0.0, %v633
      %635 = vmatmul.f32.gmra.mxu0 %v466
      %v636 = vpop.f32.mrf.mxu0
      %v637 = vadd.f32 0.0, %v636
      %638 = vmatmul.f32.gmra.mxu0 %v468
      %v639 = vpop.f32.mrf.mxu0
      %v640 = vadd.f32 0.0, %v639
      %641 = vmatmul.f32.gmra.mxu0 %v602
      %v642 = vpop.f32.mrf.mxu0
      %v643 = vadd.f32 0.0, %v642
      %644 = vdwg.mxu0
      %v645 = vadd.f32 %v593, %v622
      %v646 = vadd.f32 %v594, %v625
      %v647 = vadd.f32 %v595, %v628
      %v648 = vadd.f32 %v596, %v631
      %v649 = vadd.f32 %v597, %v634
      %v650 = vadd.f32 %v598, %v637
      %v651 = vadd.f32 %v599, %v640
      %v652 = vadd.f32 %v600, %v643
      %v654 = vrot.slane %v343, 1
      %v655 = vrot.slane %v344, 1
      %v656 = vsel %vm372, %v654, %v655
      %v657 = vsel %vm290, %v656, 0
      %659 = vmatpush.msra.mxu0 0.0
      %660 = vmatpush.msra.mxu0 0.0
      %661 = vmatpush.msra.mxu0 0.0
      %662 = vmatpush.msra.mxu0 0.0
      %663 = vmatpush.msra.mxu0 0.0
      %664 = vmatpush.msra.mxu0 0.0
      %665 = vmatpush.msra.mxu0 0.0
      %666 = vmatpush.msra.mxu0 0.0
      %667 = vmatpush.msra.mxu0 0.0
      %668 = vmatpush.msra.mxu0 0.0
      %669 = vmatpush.msra.mxu0 0.0
      %670 = vmatpush.msra.mxu0 0.0
      %671 = vmatpush.msra.mxu0 0.0
      %672 = vmatpush.msra.mxu0 0.0
      %673 = vmatpush.msra.mxu0 0.0
      %674 = vmatpush.msra.mxu0 %v351
      %675 = vmatmul.f32.gmra.mxu0 %v399
      %v676 = vpop.f32.mrf.mxu0
      %v677 = vadd.f32 0.0, %v676
      %678 = vmatmul.f32.gmra.mxu0 %v401
      %v679 = vpop.f32.mrf.mxu0
      %v680 = vadd.f32 0.0, %v679
      %681 = vmatmul.f32.gmra.mxu0 %v403
      %v682 = vpop.f32.mrf.mxu0
      %v683 = vadd.f32 0.0, %v682
      %684 = vmatmul.f32.gmra.mxu0 %v405
      %v685 = vpop.f32.mrf.mxu0
      %v686 = vadd.f32 0.0, %v685
      %687 = vmatmul.f32.gmra.mxu0 %v407
      %v688 = vpop.f32.mrf.mxu0
      %v689 = vadd.f32 0.0, %v688
      %690 = vmatmul.f32.gmra.mxu0 %v409
      %v691 = vpop.f32.mrf.mxu0
      %v692 = vadd.f32 0.0, %v691
      %693 = vmatmul.f32.gmra.mxu0 %v411
      %v694 = vpop.f32.mrf.mxu0
      %v695 = vadd.f32 0.0, %v694
      %696 = vmatmul.f32.gmra.mxu0 %v657
      %v697 = vpop.f32.mrf.mxu0
      %v698 = vadd.f32 0.0, %v697
      %699 = vdwg.mxu0
      %v700 = vadd.f32 %v645, %v677
      %v701 = vadd.f32 %v646, %v680
      %v702 = vadd.f32 %v647, %v683
      %v703 = vadd.f32 %v648, %v686
      %v704 = vadd.f32 %v649, %v689
      %v705 = vadd.f32 %v650, %v692
      %v706 = vadd.f32 %v651, %v695
      %v707 = vadd.f32 %v652, %v698
      %v708 = vrot.slane %v343, 2
      %v709 = vrot.slane %v344, 2
      %v710 = vsel %vm511, %v708, %v709
      %v711 = vsel %vm290, %v710, 0
      %713 = vmatpush.msra.mxu0 0.0
      %714 = vmatpush.msra.mxu0 0.0
      %715 = vmatpush.msra.mxu0 0.0
      %716 = vmatpush.msra.mxu0 0.0
      %717 = vmatpush.msra.mxu0 0.0
      %718 = vmatpush.msra.mxu0 0.0
      %719 = vmatpush.msra.mxu0 0.0
      %720 = vmatpush.msra.mxu0 0.0
      %721 = vmatpush.msra.mxu0 0.0
      %722 = vmatpush.msra.mxu0 0.0
      %723 = vmatpush.msra.mxu0 0.0
      %724 = vmatpush.msra.mxu0 0.0
      %725 = vmatpush.msra.mxu0 0.0
      %726 = vmatpush.msra.mxu0 0.0
      %727 = vmatpush.msra.mxu0 0.0
      %728 = vmatpush.msra.mxu0 %v352
      %729 = vmatmul.f32.gmra.mxu0 %v538
      %v730 = vpop.f32.mrf.mxu0
      %v731 = vadd.f32 0.0, %v730
      %732 = vmatmul.f32.gmra.mxu0 %v540
      %v733 = vpop.f32.mrf.mxu0
      %v734 = vadd.f32 0.0, %v733
      %735 = vmatmul.f32.gmra.mxu0 %v542
      %v736 = vpop.f32.mrf.mxu0
      %v737 = vadd.f32 0.0, %v736
      %738 = vmatmul.f32.gmra.mxu0 %v544
      %v739 = vpop.f32.mrf.mxu0
      %v740 = vadd.f32 0.0, %v739
      %741 = vmatmul.f32.gmra.mxu0 %v546
      %v742 = vpop.f32.mrf.mxu0
      %v743 = vadd.f32 0.0, %v742
      %744 = vmatmul.f32.gmra.mxu0 %v548
      %v745 = vpop.f32.mrf.mxu0
      %v746 = vadd.f32 0.0, %v745
      %747 = vmatmul.f32.gmra.mxu0 %v550
      %v748 = vpop.f32.mrf.mxu0
      %v749 = vadd.f32 0.0, %v748
      %750 = vmatmul.f32.gmra.mxu0 %v711
      %v751 = vpop.f32.mrf.mxu0
      %v752 = vadd.f32 0.0, %v751
      %753 = vdwg.mxu0
      %v754 = vadd.f32 %v700, %v731
      %v755 = vadd.f32 %v701, %v734
      %v756 = vadd.f32 %v702, %v737
      %v757 = vadd.f32 %v703, %v740
      %v758 = vadd.f32 %v704, %v743
      %v759 = vadd.f32 %v705, %v746
      %v760 = vadd.f32 %v706, %v749
      %v761 = vadd.f32 %v707, %v752
      %v763 = vsel %vm290, %v345, 0
      %765 = vmatpush.msra.mxu0 0.0
      %766 = vmatpush.msra.mxu0 0.0
      %767 = vmatpush.msra.mxu0 0.0
      %768 = vmatpush.msra.mxu0 0.0
      %769 = vmatpush.msra.mxu0 0.0
      %770 = vmatpush.msra.mxu0 0.0
      %771 = vmatpush.msra.mxu0 0.0
      %772 = vmatpush.msra.mxu0 0.0
      %773 = vmatpush.msra.mxu0 0.0
      %774 = vmatpush.msra.mxu0 0.0
      %775 = vmatpush.msra.mxu0 0.0
      %776 = vmatpush.msra.mxu0 0.0
      %777 = vmatpush.msra.mxu0 0.0
      %778 = vmatpush.msra.mxu0 0.0
      %779 = vmatpush.msra.mxu0 0.0
      %780 = vmatpush.msra.mxu0 %v353
      %781 = vmatmul.f32.gmra.mxu0 %v458
      %v782 = vpop.f32.mrf.mxu0
      %v783 = vadd.f32 0.0, %v782
      %784 = vmatmul.f32.gmra.mxu0 %v460
      %v785 = vpop.f32.mrf.mxu0
      %v786 = vadd.f32 0.0, %v785
      %787 = vmatmul.f32.gmra.mxu0 %v462
      %v788 = vpop.f32.mrf.mxu0
      %v789 = vadd.f32 0.0, %v788
      %790 = vmatmul.f32.gmra.mxu0 %v464
      %v791 = vpop.f32.mrf.mxu0
      %v792 = vadd.f32 0.0, %v791
      %793 = vmatmul.f32.gmra.mxu0 %v466
      %v794 = vpop.f32.mrf.mxu0
      %v795 = vadd.f32 0.0, %v794
      %796 = vmatmul.f32.gmra.mxu0 %v468
      %v797 = vpop.f32.mrf.mxu0
      %v798 = vadd.f32 0.0, %v797
      %799 = vmatmul.f32.gmra.mxu0 %v602
      %v800 = vpop.f32.mrf.mxu0
      %v801 = vadd.f32 0.0, %v800
      %802 = vmatmul.f32.gmra.mxu0 %v763
      %v803 = vpop.f32.mrf.mxu0
      %v804 = vadd.f32 0.0, %v803
      %805 = vdwg.mxu0
      %v806 = vadd.f32 %v754, %v783
      %v807 = vadd.f32 %v755, %v786
      %v808 = vadd.f32 %v756, %v789
      %v809 = vadd.f32 %v757, %v792
      %v810 = vadd.f32 %v758, %v795
      %v811 = vadd.f32 %v759, %v798
      %v812 = vadd.f32 %v760, %v801
      %v813 = vadd.f32 %v761, %v804
      %v815 = vrot.slane %v345, 1
      %v816 = vrot.slane %v346, 1
      %v817 = vsel %vm372, %v815, %v816
      %v818 = vsel %vm290, %v817, 0
      %820 = vmatpush.msra.mxu0 0.0
      %821 = vmatpush.msra.mxu0 0.0
      %822 = vmatpush.msra.mxu0 0.0
      %823 = vmatpush.msra.mxu0 0.0
      %824 = vmatpush.msra.mxu0 0.0
      %825 = vmatpush.msra.mxu0 0.0
      %826 = vmatpush.msra.mxu0 0.0
      %827 = vmatpush.msra.mxu0 0.0
      %828 = vmatpush.msra.mxu0 0.0
      %829 = vmatpush.msra.mxu0 0.0
      %830 = vmatpush.msra.mxu0 0.0
      %831 = vmatpush.msra.mxu0 0.0
      %832 = vmatpush.msra.mxu0 0.0
      %833 = vmatpush.msra.mxu0 0.0
      %834 = vmatpush.msra.mxu0 0.0
      %835 = vmatpush.msra.mxu0 %v354
      %836 = vmatmul.f32.gmra.mxu0 %v401
      %v837 = vpop.f32.mrf.mxu0
      %v838 = vadd.f32 0.0, %v837
      %839 = vmatmul.f32.gmra.mxu0 %v403
      %v840 = vpop.f32.mrf.mxu0
      %v841 = vadd.f32 0.0, %v840
      %842 = vmatmul.f32.gmra.mxu0 %v405
      %v843 = vpop.f32.mrf.mxu0
      %v844 = vadd.f32 0.0, %v843
      %845 = vmatmul.f32.gmra.mxu0 %v407
      %v846 = vpop.f32.mrf.mxu0
      %v847 = vadd.f32 0.0, %v846
      %848 = vmatmul.f32.gmra.mxu0 %v409
      %v849 = vpop.f32.mrf.mxu0
      %v850 = vadd.f32 0.0, %v849
      %851 = vmatmul.f32.gmra.mxu0 %v411
      %v852 = vpop.f32.mrf.mxu0
      %v853 = vadd.f32 0.0, %v852
      %854 = vmatmul.f32.gmra.mxu0 %v657
      %v855 = vpop.f32.mrf.mxu0
      %v856 = vadd.f32 0.0, %v855
      %857 = vmatmul.f32.gmra.mxu0 %v818
      %v858 = vpop.f32.mrf.mxu0
      %v859 = vadd.f32 0.0, %v858
      %860 = vdwg.mxu0
      %v861 = vadd.f32 %v806, %v838
      %v862 = vadd.f32 %v807, %v841
      %v863 = vadd.f32 %v808, %v844
      %v864 = vadd.f32 %v809, %v847
      %v865 = vadd.f32 %v810, %v850
      %v866 = vadd.f32 %v811, %v853
      %v867 = vadd.f32 %v812, %v856
      %v868 = vadd.f32 %v813, %v859
      %v869 = vrot.slane %v345, 2
      %v870 = vrot.slane %v346, 2
      %v871 = vsel %vm511, %v869, %v870
      %v872 = vsel %vm290, %v871, 0
      %874 = vmatpush.msra.mxu0 0.0
      %875 = vmatpush.msra.mxu0 0.0
      %876 = vmatpush.msra.mxu0 0.0
      %877 = vmatpush.msra.mxu0 0.0
      %878 = vmatpush.msra.mxu0 0.0
      %879 = vmatpush.msra.mxu0 0.0
      %880 = vmatpush.msra.mxu0 0.0
      %881 = vmatpush.msra.mxu0 0.0
      %882 = vmatpush.msra.mxu0 0.0
      %883 = vmatpush.msra.mxu0 0.0
      %884 = vmatpush.msra.mxu0 0.0
      %885 = vmatpush.msra.mxu0 0.0
      %886 = vmatpush.msra.mxu0 0.0
      %887 = vmatpush.msra.mxu0 0.0
      %888 = vmatpush.msra.mxu0 0.0
      %889 = vmatpush.msra.mxu0 %v355
      %890 = vmatmul.f32.gmra.mxu0 %v540
      %v891 = vpop.f32.mrf.mxu0
      %v892 = vadd.f32 0.0, %v891
      %893 = vmatmul.f32.gmra.mxu0 %v542
      %v894 = vpop.f32.mrf.mxu0
      %v895 = vadd.f32 0.0, %v894
      %896 = vmatmul.f32.gmra.mxu0 %v544
      %v897 = vpop.f32.mrf.mxu0
      %v898 = vadd.f32 0.0, %v897
      %899 = vmatmul.f32.gmra.mxu0 %v546
      %v900 = vpop.f32.mrf.mxu0
      %v901 = vadd.f32 0.0, %v900
      %902 = vmatmul.f32.gmra.mxu0 %v548
      %v903 = vpop.f32.mrf.mxu0
      %v904 = vadd.f32 0.0, %v903
      %905 = vmatmul.f32.gmra.mxu0 %v550
      %v906 = vpop.f32.mrf.mxu0
      %v907 = vadd.f32 0.0, %v906
      %908 = vmatmul.f32.gmra.mxu0 %v711
      %v909 = vpop.f32.mrf.mxu0
      %v910 = vadd.f32 0.0, %v909
      %911 = vmatmul.f32.gmra.mxu0 %v872
      %v912 = vpop.f32.mrf.mxu0
      %v913 = vadd.f32 0.0, %v912
      %914 = vdwg.mxu0
      %v915 = vadd.f32 %v861, %v892
      %v916 = vadd.f32 %v862, %v895
      %v917 = vadd.f32 %v863, %v898
      %v918 = vadd.f32 %v864, %v901
      %v919 = vadd.f32 %v865, %v904
      %v920 = vadd.f32 %v866, %v907
      %v921 = vadd.f32 %v867, %v910
      %v922 = vadd.f32 %v868, %v913
      %v923 = vperm.slane %v288, 0
      %v924 = vadd.f32 %v915, %v923
      %v925 = vadd.f32 %v916, %v923
      %v926 = vadd.f32 %v917, %v923
      %v927 = vadd.f32 %v918, %v923
      %v928 = vadd.f32 %v919, %v923
      %v929 = vadd.f32 %v920, %v923
      %v930 = vadd.f32 %v921, %v923
      %v931 = vadd.f32 %v922, %v923
      %v932 = vmax.f32 %v924, 0.0
      %v933 = vmax.f32 %v925, 0.0
      %v934 = vmax.f32 %v926, 0.0
      %v935 = vmax.f32 %v927, 0.0
      %v936 = vmax.f32 %v928, 0.0
      %v937 = vmax.f32 %v929, 0.0
      %v938 = vmax.f32 %v930, 0.0
      %v939 = vmax.f32 %v931, 0.0
      %vm940 = vcmask 130048
      %941 = vst.msk [vmem:[#allocation3] sm:$0xff] %vm940, 0.0
      %vm942 = vcmask 123904
      %943 = vst.msk [vmem:[#allocation3 + $0x8] sm:$0x3] %vm942, 0.0
      %s944 = scalar_lea.vmem [#allocation3], 144
      %945 = vst.msk [vmem:[%s944] sm:$0xff] %vm940, 0.0
      %946 = vst.msk [vmem:[%s944 + $0x8] sm:$0x3] %vm942, 0.0
      %vm947 = vcmask 122880
      %948 = vst.msk [vmem:[#allocation3] sm:$0x1] %vm947, 0.0
      %949 = vst.msk [vmem:[#allocation3 + $0x10] sm:$0x1] %vm947, 0.0
      %950 = vst.msk [vmem:[#allocation3 + $0x20] sm:$0x1] %vm947, 0.0
      %951 = vst.msk [vmem:[#allocation3 + $0x30] sm:$0x1] %vm947, 0.0
      %952 = vst.msk [vmem:[#allocation3 + $0x40] sm:$0x1] %vm947, 0.0
      %953 = vst.msk [vmem:[#allocation3 + $0x50] sm:$0x1] %vm947, 0.0
      %954 = vst.msk [vmem:[#allocation3 + $0x60] sm:$0x1] %vm947, 0.0
      %955 = vst.msk [vmem:[#allocation3 + $0x70] sm:$0x1] %vm947, 0.0
      %956 = vst.msk [vmem:[#allocation3 + $0x80] sm:$0x1] %vm947, 0.0
      %957 = vst.msk [vmem:[#allocation3 + $0x90] sm:$0x1] %vm947, 0.0
      %958 = vst.msk [vmem:[#allocation3 + $0x9] sm:$0x1] %vm947, 0.0
      %959 = vst.msk [vmem:[#allocation3 + $0x19] sm:$0x1] %vm947, 0.0
      %960 = vst.msk [vmem:[#allocation3 + $0x29] sm:$0x1] %vm947, 0.0
      %961 = vst.msk [vmem:[#allocation3 + $0x39] sm:$0x1] %vm947, 0.0
      %962 = vst.msk [vmem:[#allocation3 + $0x49] sm:$0x1] %vm947, 0.0
      %963 = vst.msk [vmem:[#allocation3 + $0x59] sm:$0x1] %vm947, 0.0
      %964 = vst.msk [vmem:[#allocation3 + $0x69] sm:$0x1] %vm947, 0.0
      %965 = vst.msk [vmem:[#allocation3 + $0x79] sm:$0x1] %vm947, 0.0
      %966 = vst.msk [vmem:[#allocation3 + $0x89] sm:$0x1] %vm947, 0.0
      %967 = vst.msk [vmem:[#allocation3 + $0x99] sm:$0x1] %vm947, 0.0
      %s968 = scalar_lea.vmem [#allocation3], 16
      %969 = vst.msk [vmem:[%s968 + $0x1] sm:$0xff] %vm940, %v932
      %970 = vst.msk [vmem:[%s968 + $0x11] sm:$0xff] %vm940, %v933
      %971 = vst.msk [vmem:[%s968 + $0x21] sm:$0xff] %vm940, %v934
      %972 = vst.msk [vmem:[%s968 + $0x31] sm:$0xff] %vm940, %v935
      %973 = vst.msk [vmem:[%s968 + $0x41] sm:$0xff] %vm940, %v936
      %974 = vst.msk [vmem:[%s968 + $0x51] sm:$0xff] %vm940, %v937
      %975 = vst.msk [vmem:[%s968 + $0x61] sm:$0xff] %vm940, %v938
      %976 = vst.msk [vmem:[%s968 + $0x71] sm:$0xff] %vm940, %v939
      %v977 = vld [vmem:[#allocation3] sm:$0xff]
      %v978 = vld [vmem:[#allocation3 + $0x8] sm:$0x3]
      %v979 = vld [vmem:[#allocation3 + $0x10] sm:$0xff]
      %v980 = vld [vmem:[#allocation3 + $0x18] sm:$0x3]
      %v981 = vld [vmem:[#allocation3 + $0x20] sm:$0xff]
      %v982 = vld [vmem:[#allocation3 + $0x28] sm:$0x3]
      %v983 = vld [vmem:[#allocation3 + $0x30] sm:$0xff]
      %v984 = vld [vmem:[#allocation3 + $0x38] sm:$0x3]
      %v985 = vld [vmem:[#allocation3 + $0x40] sm:$0xff]
      %v986 = vld [vmem:[#allocation3 + $0x48] sm:$0x3]
      %v987 = vld [vmem:[#allocation3 + $0x50] sm:$0xff]
      %v988 = vld [vmem:[#allocation3 + $0x58] sm:$0x3]
      %v989 = vld [vmem:[#allocation3 + $0x60] sm:$0xff]
      %v990 = vld [vmem:[#allocation3 + $0x68] sm:$0x3]
      %v991 = vld [vmem:[#allocation3 + $0x70] sm:$0xff]
      %v992 = vld [vmem:[#allocation3 + $0x78] sm:$0x3]
      %v993 = vld [vmem:[#allocation3 + $0x80] sm:$0xff]
      %v994 = vld [vmem:[#allocation3 + $0x88] sm:$0x3]
      %v995 = vld [vmem:[#allocation3 + $0x90] sm:$0xff]
      %v996 = vld [vmem:[#allocation3 + $0x98] sm:$0x3]
      %v997 = vadd.f32 %v977, %v979
      %v998 = vadd.f32 %v978, %v980
      %v999 = vadd.f32 %v979, %v981
      %v1000 = vadd.f32 %v980, %v982
      %v1001 = vadd.f32 %v981, %v983
      %v1002 = vadd.f32 %v982, %v984
      %v1003 = vadd.f32 %v983, %v985
      %v1004 = vadd.f32 %v984, %v986
      %v1005 = vadd.f32 %v985, %v987
      %v1006 = vadd.f32 %v986, %v988
      %v1007 = vadd.f32 %v987, %v989
      %v1008 = vadd.f32 %v988, %v990
      %v1009 = vadd.f32 %v989, %v991
      %v1010 = vadd.f32 %v990, %v992
      %v1011 = vadd.f32 %v991, %v993
      %v1012 = vadd.f32 %v992, %v994
      %v1013 = vadd.f32 %v997, %v981
      %v1014 = vadd.f32 %v998, %v982
      %v1015 = vadd.f32 %v999, %v983
      %v1016 = vadd.f32 %v1000, %v984
      %v1017 = vadd.f32 %v1001, %v985
      %v1018 = vadd.f32 %v1002, %v986
      %v1019 = vadd.f32 %v1003, %v987
      %v1020 = vadd.f32 %v1004, %v988
      %v1021 = vadd.f32 %v1005, %v989
      %v1022 = vadd.f32 %v1006, %v990
      %v1023 = vadd.f32 %v1007, %v991
      %v1024 = vadd.f32 %v1008, %v992
      %v1025 = vadd.f32 %v1009, %v993
      %v1026 = vadd.f32 %v1010, %v994
      %v1027 = vadd.f32 %v1011, %v995
      %v1028 = vadd.f32 %v1012, %v996
      %v1029 = vmax.f32 %v977, %v979
      %v1030 = vmax.f32 %v978, %v980
      %v1031 = vmax.f32 %v979, %v981
      %v1032 = vmax.f32 %v980, %v982
      %v1033 = vmax.f32 %v981, %v983
      %v1034 = vmax.f32 %v982, %v984
      %v1035 = vmax.f32 %v983, %v985
      %v1036 = vmax.f32 %v984, %v986
      %v1037 = vmax.f32 %v985, %v987
      %v1038 = vmax.f32 %v986, %v988
      %v1039 = vmax.f32 %v987, %v989
      %v1040 = vmax.f32 %v988, %v990
      %v1041 = vmax.f32 %v989, %v991
      %v1042 = vmax.f32 %v990, %v992
      %v1043 = vmax.f32 %v991, %v993
      %v1044 = vmax.f32 %v992, %v994
      %v1045 = vmax.f32 %v1029, %v981
      %v1046 = vmax.f32 %v1030, %v982
      %v1047 = vmax.f32 %v1031, %v983
      %v1048 = vmax.f32 %v1032, %v984
      %v1049 = vmax.f32 %v1033, %v985
      %v1050 = vmax.f32 %v1034, %v986
      %v1051 = vmax.f32 %v1035, %v987
      %v1052 = vmax.f32 %v1036, %v988
      %v1053 = vmax.f32 %v1037, %v989
      %v1054 = vmax.f32 %v1038, %v990
      %v1055 = vmax.f32 %v1039, %v991
      %v1056 = vmax.f32 %v1040, %v992
      %v1057 = vmax.f32 %v1041, %v993
      %v1058 = vmax.f32 %v1042, %v994
      %v1059 = vmax.f32 %v1043, %v995
      %v1060 = vmax.f32 %v1044, %v996
      %v1077 = vrot.slane %v1013, 1
      %v1078 = vrot.slane %v1014, 1
      %v1079 = vsel %vm372, %v1077, %v1078
      %v1080 = vrot.slane %v1015, 1
      %v1081 = vrot.slane %v1016, 1
      %v1082 = vsel %vm372, %v1080, %v1081
      %v1083 = vrot.slane %v1017, 1
      %v1084 = vrot.slane %v1018, 1
      %v1085 = vsel %vm372, %v1083, %v1084
      %v1086 = vrot.slane %v1019, 1
      %v1087 = vrot.slane %v1020, 1
      %v1088 = vsel %vm372, %v1086, %v1087
      %v1089 = vrot.slane %v1021, 1
      %v1090 = vrot.slane %v1022, 1
      %v1091 = vsel %vm372, %v1089, %v1090
      %v1092 = vrot.slane %v1023, 1
      %v1093 = vrot.slane %v1024, 1
      %v1094 = vsel %vm372, %v1092, %v1093
      %v1095 = vrot.slane %v1025, 1
      %v1096 = vrot.slane %v1026, 1
      %v1097 = vsel %vm372, %v1095, %v1096
      %v1098 = vrot.slane %v1027, 1
      %v1099 = vrot.slane %v1028, 1
      %v1100 = vsel %vm372, %v1098, %v1099
      %v1109 = vadd.f32 %v1013, %v1079
      %v1110 = vadd.f32 %v1015, %v1082
      %v1111 = vadd.f32 %v1017, %v1085
      %v1112 = vadd.f32 %v1019, %v1088
      %v1113 = vadd.f32 %v1021, %v1091
      %v1114 = vadd.f32 %v1023, %v1094
      %v1115 = vadd.f32 %v1025, %v1097
      %v1116 = vadd.f32 %v1027, %v1100
      %v1117 = vrot.slane %v1013, 2
      %v1118 = vrot.slane %v1014, 2
      %v1119 = vsel %vm511, %v1117, %v1118
      %v1120 = vrot.slane %v1015, 2
      %v1121 = vrot.slane %v1016, 2
      %v1122 = vsel %vm511, %v1120, %v1121
      %v1123 = vrot.slane %v1017, 2
      %v1124 = vrot.slane %v1018, 2
      %v1125 = vsel %vm511, %v1123, %v1124
      %v1126 = vrot.slane %v1019, 2
      %v1127 = vrot.slane %v1020, 2
      %v1128 = vsel %vm511, %v1126, %v1127
      %v1129 = vrot.slane %v1021, 2
      %v1130 = vrot.slane %v1022, 2
      %v1131 = vsel %vm511, %v1129, %v1130
      %v1132 = vrot.slane %v1023, 2
      %v1133 = vrot.slane %v1024, 2
      %v1134 = vsel %vm511, %v1132, %v1133
      %v1135 = vrot.slane %v1025, 2
      %v1136 = vrot.slane %v1026, 2
      %v1137 = vsel %vm511, %v1135, %v1136
      %v1138 = vrot.slane %v1027, 2
      %v1139 = vrot.slane %v1028, 2
      %v1140 = vsel %vm511, %v1138, %v1139
      %v1149 = vadd.f32 %v1109, %v1119
      %v1150 = vadd.f32 %v1110, %v1122
      %v1151 = vadd.f32 %v1111, %v1125
      %v1152 = vadd.f32 %v1112, %v1128
      %v1153 = vadd.f32 %v1113, %v1131
      %v1154 = vadd.f32 %v1114, %v1134
      %v1155 = vadd.f32 %v1115, %v1137
      %v1156 = vadd.f32 %v1116, %v1140
      %v1157 = vmul.f32 %v1149, 0.11111111
      %v1158 = vmul.f32 %v1150, 0.11111111
      %v1159 = vmul.f32 %v1151, 0.11111111
      %v1160 = vmul.f32 %v1152, 0.11111111
      %v1161 = vmul.f32 %v1153, 0.11111111
      %v1162 = vmul.f32 %v1154, 0.11111111
      %v1163 = vmul.f32 %v1155, 0.11111111
      %v1164 = vmul.f32 %v1156, 0.11111111
      %v1181 = vrot.slane %v1045, 1
      %v1182 = vrot.slane %v1046, 1
      %v1183 = vsel %vm372, %v1181, %v1182
      %v1184 = vrot.slane %v1047, 1
      %v1185 = vrot.slane %v1048, 1
      %v1186 = vsel %vm372, %v1184, %v1185
      %v1187 = vrot.slane %v1049, 1
      %v1188 = vrot.slane %v1050, 1
      %v1189 = vsel %vm372, %v1187, %v1188
      %v1190 = vrot.slane %v1051, 1
      %v1191 = vrot.slane %v1052, 1
      %v1192 = vsel %vm372, %v1190, %v1191
      %v1193 = vrot.slane %v1053, 1
      %v1194 = vrot.slane %v1054, 1
      %v1195 = vsel %vm372, %v1193, %v1194
      %v1196 = vrot.slane %v1055, 1
      %v1197 = vrot.slane %v1056, 1
      %v1198 = vsel %vm372, %v1196, %v1197
      %v1199 = vrot.slane %v1057, 1
      %v1200 = vrot.slane %v1058, 1
      %v1201 = vsel %vm372, %v1199, %v1200
      %v1202 = vrot.slane %v1059, 1
      %v1203 = vrot.slane %v1060, 1
      %v1204 = vsel %vm372, %v1202, %v1203
      %v1213 = vmax.f32 %v1045, %v1183
      %v1214 = vmax.f32 %v1047, %v1186
      %v1215 = vmax.f32 %v1049, %v1189
      %v1216 = vmax.f32 %v1051, %v1192
      %v1217 = vmax.f32 %v1053, %v1195
      %v1218 = vmax.f32 %v1055, %v1198
      %v1219 = vmax.f32 %v1057, %v1201
      %v1220 = vmax.f32 %v1059, %v1204
      %v1221 = vrot.slane %v1045, 2
      %v1222 = vrot.slane %v1046, 2
      %v1223 = vsel %vm511, %v1221, %v1222
      %v1224 = vrot.slane %v1047, 2
      %v1225 = vrot.slane %v1048, 2
      %v1226 = vsel %vm511, %v1224, %v1225
      %v1227 = vrot.slane %v1049, 2
      %v1228 = vrot.slane %v1050, 2
      %v1229 = vsel %vm511, %v1227, %v1228
      %v1230 = vrot.slane %v1051, 2
      %v1231 = vrot.slane %v1052, 2
      %v1232 = vsel %vm511, %v1230, %v1231
      %v1233 = vrot.slane %v1053, 2
      %v1234 = vrot.slane %v1054, 2
      %v1235 = vsel %vm511, %v1233, %v1234
      %v1236 = vrot.slane %v1055, 2
      %v1237 = vrot.slane %v1056, 2
      %v1238 = vsel %vm511, %v1236, %v1237
      %v1239 = vrot.slane %v1057, 2
      %v1240 = vrot.slane %v1058, 2
      %v1241 = vsel %vm511, %v1239, %v1240
      %v1242 = vrot.slane %v1059, 2
      %v1243 = vrot.slane %v1060, 2
      %v1244 = vsel %vm511, %v1242, %v1243
      %v1253 = vmax.f32 %v1213, %v1223
      %v1254 = vmax.f32 %v1214, %v1226
      %v1255 = vmax.f32 %v1215, %v1229
      %v1256 = vmax.f32 %v1216, %v1232
      %v1257 = vmax.f32 %v1217, %v1235
      %v1258 = vmax.f32 %v1218, %v1238
      %v1259 = vmax.f32 %v1219, %v1241
      %v1260 = vmax.f32 %v1220, %v1244
      %v1261 = vsel %vm940, %v1157, 0.0
      %v1262 = vsel %vm940, %v1158, 0.0
      %v1263 = vadd.f32 %v1261, %v1262
      %v1264 = vsel %vm940, %v1159, 0.0
      %v1265 = vadd.f32 %v1263, %v1264
      %v1266 = vsel %vm940, %v1160, 0.0
      %v1267 = vadd.f32 %v1265, %v1266
      %v1268 = vsel %vm940, %v1161, 0.0
      %v1269 = vadd.f32 %v1267, %v1268
      %v1270 = vsel %vm940, %v1162, 0.0
      %v1271 = vadd.f32 %v1269, %v1270
      %v1272 = vsel %vm940, %v1163, 0.0
      %v1273 = vadd.f32 %v1271, %v1272
      %v1274 = vsel %vm940, %v1164, 0.0
      %v1275 = vadd.f32 %v1273, %v1274
      %v1276 = vrot.slane %v1275, 4
      %v1277 = vadd.f32 %v1275, %v1276
      %v1278 = vrot.slane %v1277, 2
      %v1279 = vadd.f32 %v1277, %v1278
      %v1280 = vrot.slane %v1279, 1
      %v1281 = vadd.f32 %v1279, %v1280
      %v1282 = vmul.f32 %v1281, 0.015625
      %v1283 = vsel %vm940, %v1253, 0.0
      %v1284 = vsel %vm940, %v1254, 0.0
      %v1285 = vadd.f32 %v1283, %v1284
      %v1286 = vsel %vm940, %v1255, 0.0
      %v1287 = vadd.f32 %v1285, %v1286
      %v1288 = vsel %vm940, %v1256, 0.0
      %v1289 = vadd.f32 %v1287, %v1288
      %v1290 = vsel %vm940, %v1257, 0.0
      %v1291 = vadd.f32 %v1289, %v1290
      %v1292 = vsel %vm940, %v1258, 0.0
      %v1293 = vadd.f32 %v1291, %v1292
      %v1294 = vsel %vm940, %v1259, 0.0
      %v1295 = vadd.f32 %v1293, %v1294
      %v1296 = vsel %vm940, %v1260, 0.0
      %v1297 = vadd.f32 %v1295, %v1296
      %v1298 = vrot.slane %v1297, 4
      %v1299 = vadd.f32 %v1297, %v1298
      %v1300 = vrot.slane %v1299, 2
      %v1301 = vadd.f32 %v1299, %v1300
      %v1302 = vrot.slane %v1301, 1
      %v1303 = vadd.f32 %v1301, %v1302
      %v1304 = vmul.f32 %v1303, 0.015625
      %1306 = vrot.lane.b32.xlu0 %v1304, 16
      %v1307 = vpop.permute.xlu0 %1306
      %v1309 = vsel %vm940, %v1282, %v1307
      %v1310 = vld [vmem:[%s2] sm:$0xff]
      %v1311 = vld [vmem:[%s2 + $0x8] sm:$0xff]
      %v1312 = vld [vmem:[%s2 + $0x10] sm:$0xff]
      %v1313 = vld [vmem:[%s2 + $0x18] sm:$0xff]
      %vm1314 = vcmask 261120
      %v1316 = vsel %vm1314, %v1309, 0
      %1318 = vmatpush.msra.mxu0 0.0
      %1319 = vmatpush.msra.mxu0 0.0
      %1320 = vmatpush.msra.mxu0 0.0
      %1321 = vmatpush.msra.mxu0 0.0
      %1322 = vmatpush.msra.mxu0 0.0
      %1323 = vmatpush.msra.mxu0 0.0
      %1324 = vmatpush.msra.mxu0 0.0
      %1325 = vmatpush.msra.mxu0 0.0
      %1326 = vmatpush.msra.mxu0 0.0
      %1327 = vmatpush.msra.mxu0 0.0
      %1328 = vmatpush.msra.mxu0 0.0
      %1329 = vmatpush.msra.mxu0 0.0
      %1330 = vmatpush.msra.mxu0 %v1313
      %1331 = vmatpush.msra.mxu0 %v1312
      %1332 = vmatpush.msra.mxu0 %v1311
      %1333 = vmatpush.msra.mxu0 %v1310
      %1334 = vmatmul.f32.gmra.mxu0 %v1316
      %v1335 = vpop.f32.mrf.mxu0
      %v1336 = vadd.f32 %v287, %v1335
      %1337 = vdwg.mxu0
      %vm1338 = vcmask 253952
      %v1339 = vsel %vm1338, %v1336, 0.0
      %1340 = vadd.xlane.f32.xlu0 %v1339
      %v1341 = vpop.xlane.xlu0 %1340
      %v1342 = vrcp.pop 32.0
      %v1343 = vmul.f32 32.0, %v1342
      %v1344 = vsub.f32 1.0, %v1343
      %v1345 = vmul.f32 %v1342, %v1344
      %v1346 = vadd.f32 %v1342, %v1345
      %vm1347 = vweird.f32 %v1342
      %v1348 = vsel %vm1347, %v1342, %v1346
      %v1349 = vmul.f32 %v1341, %v1348
      %v1350 = vsub.f32 %v1336, %v1349
      %v1351 = vmul.f32 %v1350, %v1350
      %v1352 = vsel %vm1338, %v1351, 0.0
      %1353 = vadd.xlane.f32.xlu0 %v1352
      %v1354 = vpop.xlane.xlu0 %1353
      %v1355 = vmul.f32 %v1354, %v1348
      %v1356 = vadd.f32 %v1355, 1e-05
      %v1357 = vrsqrt.pop %v1356
      %v1358 = vmul.f32 %v1357, %v1356
      %v1359 = vmul.f32 %v1358, %v1357
      %v1360 = vmul.f32 0.5, %v1359
      %v1361 = vsub.f32 1.5, %v1360
      %v1362 = vmul.f32 %v1357, %v1361
      %vm1363 = vweird.f32 %v1356
      %vm1364 = vweird.f32 %v1357
      %vm1365 = vmor %vm1363, %vm1364
      %v1366 = vsel %vm1365, %v1357, %v1362
      %v1367 = vmul.f32 %v1350, %v1366
      %v1369 = vrot.slane %v287, 1
      %v1371 = vmul.f32 %v1367, %v1369
      %v1372 = vrot.slane %v287, 2
      %v1374 = vadd.f32 %v1371, %v1372
      %v1375 = vld [vmem:[%s3] sm:$0xff]
      %v1376 = vld [vmem:[%s3 + $0x8] sm:$0xff]
      %v1377 = vld [vmem:[%s3 + $0x10] sm:$0xff]
      %v1378 = vld [vmem:[%s3 + $0x18] sm:$0xff]
      %v1380 = vrot.slane %v288, 1
      %v1383 = vsel %vm1314, %v1374, 0
      %1385 = vmatpush.msra.mxu0 0.0
      %1386 = vmatpush.msra.mxu0 0.0
      %1387 = vmatpush.msra.mxu0 0.0
      %1388 = vmatpush.msra.mxu0 0.0
      %1389 = vmatpush.msra.mxu0 0.0
      %1390 = vmatpush.msra.mxu0 0.0
      %1391 = vmatpush.msra.mxu0 0.0
      %1392 = vmatpush.msra.mxu0 0.0
      %1393 = vmatpush.msra.mxu0 0.0
      %1394 = vmatpush.msra.mxu0 0.0
      %1395 = vmatpush.msra.mxu0 0.0
      %1396 = vmatpush.msra.mxu0 0.0
      %1397 = vmatpush.msra.mxu0 %v1378
      %1398 = vmatpush.msra.mxu0 %v1377
      %1399 = vmatpush.msra.mxu0 %v1376
      %1400 = vmatpush.msra.mxu0 %v1375
      %1401 = vmatmul.f32.gmra.mxu0 %v1383
      %v1402 = vpop.f32.mrf.mxu0
      %v1403 = vadd.f32 %v1380, %v1402
      %1404 = vdwg.mxu0
      %v1405 = vsel %vm947, %v1403, 0.0
      %1406 = vadd.xlane.f32.xlu0 %v1405
      %v1407 = vpop.xlane.xlu0 %1406
      %v1408 = vrcp.pop 16.0
      %v1409 = vmul.f32 16.0, %v1408
      %v1410 = vsub.f32 1.0, %v1409
      %v1411 = vmul.f32 %v1408, %v1410
      %v1412 = vadd.f32 %v1408, %v1411
      %vm1413 = vweird.f32 %v1408
      %v1414 = vsel %vm1413, %v1408, %v1412
      %v1415 = vmul.f32 %v1407, %v1414
      %v1416 = vsub.f32 %v1403, %v1415
      %v1417 = vmul.f32 %v1416, %v1416
      %v1418 = vsel %vm947, %v1417, 0.0
      %1419 = vadd.xlane.f32.xlu0 %v1418
      %v1420 = vpop.xlane.xlu0 %1419
      %v1421 = vmul.f32 %v1420, %v1414
      %v1422 = vadd.f32 %v1421, 1e-05
      %v1423 = vrsqrt.pop %v1422
      %v1424 = vmul.f32 %v1423, %v1422
      %v1425 = vmul.f32 %v1424, %v1423
      %v1426 = vmul.f32 0.5, %v1425
      %v1427 = vsub.f32 1.5, %v1426
      %v1428 = vmul.f32 %v1423, %v1427
      %vm1429 = vweird.f32 %v1422
      %vm1430 = vweird.f32 %v1423
      %vm1431 = vmor %vm1429, %vm1430
      %v1432 = vsel %vm1431, %v1423, %v1428
      %v1433 = vmul.f32 %v1416, %v1432
      %v1434 = vrot.slane %v288, 2
      %v1436 = vmul.f32 %v1433, %v1434
      %v1437 = vrot.slane %v288, 3
      %v1439 = vadd.f32 %v1436, %v1437
      %v1440 = vld [vmem:[%s4] sm:$0xff]
      %v1441 = vld [vmem:[%s4 + $0x8] sm:$0xff]
      %v1442 = vld [vmem:[%s4 + $0x10] sm:$0xff]
      %v1443 = vld [vmem:[%s4 + $0x18] sm:$0xff]
      %v1444 = vrot.slane %v288, 4
      %1446 = vmatpush.msra.mxu0 0.0
      %1447 = vmatpush.msra.mxu0 0.0
      %1448 = vmatpush.msra.mxu0 0.0
      %1449 = vmatpush.msra.mxu0 0.0
      %1450 = vmatpush.msra.mxu0 0.0
      %1451 = vmatpush.msra.mxu0 0.0
      %1452 = vmatpush.msra.mxu0 0.0
      %1453 = vmatpush.msra.mxu0 0.0
      %1454 = vmatpush.msra.mxu0 0.0
      %1455 = vmatpush.msra.mxu0 0.0
      %1456 = vmatpush.msra.mxu0 0.0
      %1457 = vmatpush.msra.mxu0 0.0
      %1458 = vmatpush.msra.mxu0 %v1443
      %1459 = vmatpush.msra.mxu0 %v1442
      %1460 = vmatpush.msra.mxu0 %v1441
      %1461 = vmatpush.msra.mxu0 %v1440
      %1462 = vmatmul.f32.gmra.mxu0 %v1383
      %v1463 = vpop.f32.mrf.mxu0
      %v1464 = vadd.f32 %v1444, %v1463
      %1465 = vdwg.mxu0
      %v1466 = vsel %vm947, %v1464, 0.0
      %1467 = vadd.xlane.f32.xlu0 %v1466
      %v1468 = vpop.xlane.xlu0 %1467
      %v1469 = vmul.f32 %v1468, %v1414
      %v1470 = vsub.f32 %v1464, %v1469
      %v1471 = vmul.f32 %v1470, %v1470
      %v1472 = vsel %vm947, %v1471, 0.0
      %1473 = vadd.xlane.f32.xlu0 %v1472
      %v1474 = vpop.xlane.xlu0 %1473
      %v1475 = vmul.f32 %v1474, %v1414
      %v1476 = vadd.f32 %v1475, 1e-05
      %v1477 = vrsqrt.pop %v1476
      %v1478 = vmul.f32 %v1477, %v1476
      %v1479 = vmul.f32 %v1478, %v1477
      %v1480 = vmul.f32 0.5, %v1479
      %v1481 = vsub.f32 1.5, %v1480
      %v1482 = vmul.f32 %v1477, %v1481
      %vm1483 = vweird.f32 %v1476
      %vm1484 = vweird.f32 %v1477
      %vm1485 = vmor %vm1483, %vm1484
      %v1486 = vsel %vm1485, %v1477, %v1482
      %v1487 = vmul.f32 %v1470, %v1486
      %v1488 = vrot.slane %v288, 5
      %v1490 = vmul.f32 %v1487, %v1488
      %v1491 = vrot.slane %v288, 6
      %v1493 = vadd.f32 %v1490, %v1491
      %v1494 = vmax.f32 %v1439, %v1493
      %v1495 = vsub.f32 %v1439, %v1494
      %v1496 = vmul.f32 %v1495, 1.442695
      %v1497 = vpow.pop %v1496
      %v1498 = vsub.f32 %v1493, %v1494
      %v1499 = vmul.f32 %v1498, 1.442695
      %v1500 = vpow.pop %v1499
      %v1501 = vadd.f32 %v1497, %v1500
      %v1502 = vrcp.pop %v1501
      %v1503 = vmul.f32 %v1501, %v1502
      %v1504 = vsub.f32 1.0, %v1503
      %v1505 = vmul.f32 %v1502, %v1504
      %v1506 = vadd.f32 %v1502, %v1505
      %vm1507 = vweird.f32 %v1501
      %vm1508 = vweird.f32 %v1502
      %vm1509 = vmor %vm1507, %vm1508
      %v1510 = vsel %vm1509, %v1502, %v1506
      %v1511 = vand.u32 2147483647, %v1501
      %vm1512 = vcmp.eq.f32.partialorder %v1511, 8.507059e+37
      %v1513 = vand.u32 %v1501, 2147483648
      %v1514 = vor.u32 1.1754944e-38, %v1513
      %v1515 = vsel %vm1512, %v1514, %v1510
      %v1516 = vmul.f32 1.0, %v1515
      %v1517 = vmul.f32 %v1497, %v1516
      %v1518 = vmul.f32 %v1500, %v1516
      %v1519 = vperm.slane %v1517, 0
      %v1520 = vmul.f32 %v1157, %v1519
      %v1521 = vmul.f32 %v1158, %v1519
      %v1522 = vmul.f32 %v1159, %v1519
      %v1523 = vmul.f32 %v1160, %v1519
      %v1524 = vmul.f32 %v1161, %v1519
      %v1525 = vmul.f32 %v1162, %v1519
      %v1526 = vmul.f32 %v1163, %v1519
      %v1527 = vmul.f32 %v1164, %v1519
      %v1528 = vperm.slane %v1518, 0
      %v1529 = vmul.f32 %v1253, %v1528
      %v1530 = vmul.f32 %v1254, %v1528
      %v1531 = vmul.f32 %v1255, %v1528
      %v1532 = vmul.f32 %v1256, %v1528
      %v1533 = vmul.f32 %v1257, %v1528
      %v1534 = vmul.f32 %v1258, %v1528
      %v1535 = vmul.f32 %v1259, %v1528
      %v1536 = vmul.f32 %v1260, %v1528
      %v1537 = vadd.f32 %v1520, %v1529
      %v1538 = vadd.f32 %v1521, %v1530
      %v1539 = vadd.f32 %v1522, %v1531
      %v1540 = vadd.f32 %v1523, %v1532
      %v1541 = vadd.f32 %v1524, %v1533
      %v1542 = vadd.f32 %v1525, %v1534
      %v1543 = vadd.f32 %v1526, %v1535
      %v1544 = vadd.f32 %v1527, %v1536
      %v1545 = vsel %vm940, %v1537, 0.0
      %1546 = vadd.xlane.f32.xlu0 %v1545
      %v1547 = vpop.xlane.xlu0 %1546
      %v1548 = vsel %vm940, %v1538, 0.0
      %1549 = vadd.xlane.f32.xlu0 %v1548
      %v1550 = vpop.xlane.xlu0 %1549
      %v1551 = vsel %vm940, %v1539, 0.0
      %1552 = vadd.xlane.f32.xlu0 %v1551
      %v1553 = vpop.xlane.xlu0 %1552
      %v1554 = vsel %vm940, %v1540, 0.0
      %1555 = vadd.xlane.f32.xlu0 %v1554
      %v1556 = vpop.xlane.xlu0 %1555
      %v1557 = vsel %vm940, %v1541, 0.0
      %1558 = vadd.xlane.f32.xlu0 %v1557
      %v1559 = vpop.xlane.xlu0 %1558
      %v1560 = vsel %vm940, %v1542, 0.0
      %1561 = vadd.xlane.f32.xlu0 %v1560
      %v1562 = vpop.xlane.xlu0 %1561
      %v1563 = vsel %vm940, %v1543, 0.0
      %1564 = vadd.xlane.f32.xlu0 %v1563
      %v1565 = vpop.xlane.xlu0 %1564
      %v1566 = vsel %vm940, %v1544, 0.0
      %1567 = vadd.xlane.f32.xlu0 %v1566
      %v1568 = vpop.xlane.xlu0 %1567
      %v1569 = vmul.f32 %v1547, 0.0625
      %v1570 = vmul.f32 %v1550, 0.0625
      %v1571 = vmul.f32 %v1553, 0.0625
      %v1572 = vmul.f32 %v1556, 0.0625
      %v1573 = vmul.f32 %v1559, 0.0625
      %v1574 = vmul.f32 %v1562, 0.0625
      %v1575 = vmul.f32 %v1565, 0.0625
      %v1576 = vmul.f32 %v1568, 0.0625
      %v1577 = vsub.f32 %v1537, %v1569
      %v1578 = vsub.f32 %v1538, %v1570
      %v1579 = vsub.f32 %v1539, %v1571
      %v1580 = vsub.f32 %v1540, %v1572
      %v1581 = vsub.f32 %v1541, %v1573
      %v1582 = vsub.f32 %v1542, %v1574
      %v1583 = vsub.f32 %v1543, %v1575
      %v1584 = vsub.f32 %v1544, %v1576
      %v1585 = vmul.f32 %v1577, %v1577
      %v1586 = vmul.f32 %v1578, %v1578
      %v1587 = vmul.f32 %v1579, %v1579
      %v1588 = vmul.f32 %v1580, %v1580
      %v1589 = vmul.f32 %v1581, %v1581
      %v1590 = vmul.f32 %v1582, %v1582
      %v1591 = vmul.f32 %v1583, %v1583
      %v1592 = vmul.f32 %v1584, %v1584
      %v1593 = vsel %vm940, %v1585, 0.0
      %1594 = vadd.xlane.f32.xlu0 %v1593
      %v1595 = vpop.xlane.xlu0 %1594
      %v1596 = vsel %vm940, %v1586, 0.0
      %1597 = vadd.xlane.f32.xlu0 %v1596
      %v1598 = vpop.xlane.xlu0 %1597
      %v1599 = vsel %vm940, %v1587, 0.0
      %1600 = vadd.xlane.f32.xlu0 %v1599
      %v1601 = vpop.xlane.xlu0 %1600
      %v1602 = vsel %vm940, %v1588, 0.0
      %1603 = vadd.xlane.f32.xlu0 %v1602
      %v1604 = vpop.xlane.xlu0 %1603
      %v1605 = vsel %vm940, %v1589, 0.0
      %1606 = vadd.xlane.f32.xlu0 %v1605
      %v1607 = vpop.xlane.xlu0 %1606
      %v1608 = vsel %vm940, %v1590, 0.0
      %1609 = vadd.xlane.f32.xlu0 %v1608
      %v1610 = vpop.xlane.xlu0 %1609
      %v1611 = vsel %vm940, %v1591, 0.0
      %1612 = vadd.xlane.f32.xlu0 %v1611
      %v1613 = vpop.xlane.xlu0 %1612
      %v1614 = vsel %vm940, %v1592, 0.0
      %1615 = vadd.xlane.f32.xlu0 %v1614
      %v1616 = vpop.xlane.xlu0 %1615
      %v1617 = vmul.f32 %v1595, 0.0625
      %v1618 = vmul.f32 %v1598, 0.0625
      %v1619 = vmul.f32 %v1601, 0.0625
      %v1620 = vmul.f32 %v1604, 0.0625
      %v1621 = vmul.f32 %v1607, 0.0625
      %v1622 = vmul.f32 %v1610, 0.0625
      %v1623 = vmul.f32 %v1613, 0.0625
      %v1624 = vmul.f32 %v1616, 0.0625
      %v1625 = vadd.f32 %v1617, 1e-05
      %v1626 = vadd.f32 %v1618, 1e-05
      %v1627 = vadd.f32 %v1619, 1e-05
      %v1628 = vadd.f32 %v1620, 1e-05
      %v1629 = vadd.f32 %v1621, 1e-05
      %v1630 = vadd.f32 %v1622, 1e-05
      %v1631 = vadd.f32 %v1623, 1e-05
      %v1632 = vadd.f32 %v1624, 1e-05
      %v1633 = vrsqrt.pop %v1625
      %v1634 = vmul.f32 %v1633, %v1625
      %v1635 = vmul.f32 %v1634, %v1633
      %v1636 = vmul.f32 0.5, %v1635
      %v1637 = vsub.f32 1.5, %v1636
      %v1638 = vmul.f32 %v1633, %v1637
      %vm1639 = vweird.f32 %v1625
      %vm1640 = vweird.f32 %v1633
      %vm1641 = vmor %vm1639, %vm1640
      %v1642 = vsel %vm1641, %v1633, %v1638
      %v1643 = vrsqrt.pop %v1626
      %v1644 = vmul.f32 %v1643, %v1626
      %v1645 = vmul.f32 %v1644, %v1643
      %v1646 = vmul.f32 0.5, %v1645
      %v1647 = vsub.f32 1.5, %v1646
      %v1648 = vmul.f32 %v1643, %v1647
      %vm1649 = vweird.f32 %v1626
      %vm1650 = vweird.f32 %v1643
      %vm1651 = vmor %vm1649, %vm1650
      %v1652 = vsel %vm1651, %v1643, %v1648
      %v1653 = vrsqrt.pop %v1627
      %v1654 = vmul.f32 %v1653, %v1627
      %v1655 = vmul.f32 %v1654, %v1653
      %v1656 = vmul.f32 0.5, %v1655
      %v1657 = vsub.f32 1.5, %v1656
      %v1658 = vmul.f32 %v1653, %v1657
      %vm1659 = vweird.f32 %v1627
      %vm1660 = vweird.f32 %v1653
      %vm1661 = vmor %vm1659, %vm1660
      %v1662 = vsel %vm1661, %v1653, %v1658
      %v1663 = vrsqrt.pop %v1628
      %v1664 = vmul.f32 %v1663, %v1628
      %v1665 = vmul.f32 %v1664, %v1663
      %v1666 = vmul.f32 0.5, %v1665
      %v1667 = vsub.f32 1.5, %v1666
      %v1668 = vmul.f32 %v1663, %v1667
      %vm1669 = vweird.f32 %v1628
      %vm1670 = vweird.f32 %v1663
      %vm1671 = vmor %vm1669, %vm1670
      %v1672 = vsel %vm1671, %v1663, %v1668
      %v1673 = vrsqrt.pop %v1629
      %v1674 = vmul.f32 %v1673, %v1629
      %v1675 = vmul.f32 %v1674, %v1673
      %v1676 = vmul.f32 0.5, %v1675
      %v1677 = vsub.f32 1.5, %v1676
      %v1678 = vmul.f32 %v1673, %v1677
      %vm1679 = vweird.f32 %v1629
      %vm1680 = vweird.f32 %v1673
      %vm1681 = vmor %vm1679, %vm1680
      %v1682 = vsel %vm1681, %v1673, %v1678
      %v1683 = vrsqrt.pop %v1630
      %v1684 = vmul.f32 %v1683, %v1630
      %v1685 = vmul.f32 %v1684, %v1683
      %v1686 = vmul.f32 0.5, %v1685
      %v1687 = vsub.f32 1.5, %v1686
      %v1688 = vmul.f32 %v1683, %v1687
      %vm1689 = vweird.f32 %v1630
      %vm1690 = vweird.f32 %v1683
      %vm1691 = vmor %vm1689, %vm1690
      %v1692 = vsel %vm1691, %v1683, %v1688
      %v1693 = vrsqrt.pop %v1631
      %v1694 = vmul.f32 %v1693, %v1631
      %v1695 = vmul.f32 %v1694, %v1693
      %v1696 = vmul.f32 0.5, %v1695
      %v1697 = vsub.f32 1.5, %v1696
      %v1698 = vmul.f32 %v1693, %v1697
      %vm1699 = vweird.f32 %v1631
      %vm1700 = vweird.f32 %v1693
      %vm1701 = vmor %vm1699, %vm1700
      %v1702 = vsel %vm1701, %v1693, %v1698
      %v1703 = vrsqrt.pop %v1632
      %v1704 = vmul.f32 %v1703, %v1632
      %v1705 = vmul.f32 %v1704, %v1703
      %v1706 = vmul.f32 0.5, %v1705
      %v1707 = vsub.f32 1.5, %v1706
      %v1708 = vmul.f32 %v1703, %v1707
      %vm1709 = vweird.f32 %v1632
      %vm1710 = vweird.f32 %v1703
      %vm1711 = vmor %vm1709, %vm1710
      %v1712 = vsel %vm1711, %v1703, %v1708
      %v1713 = vmul.f32 %v1577, %v1642
      %v1714 = vmul.f32 %v1578, %v1652
      %v1715 = vmul.f32 %v1579, %v1662
      %v1716 = vmul.f32 %v1580, %v1672
      %v1717 = vmul.f32 %v1581, %v1682
      %v1718 = vmul.f32 %v1582, %v1692
      %v1719 = vmul.f32 %v1583, %v1702
      %v1720 = vmul.f32 %v1584, %v1712
      %v1721 = vperm.slane %v288, 7
      %v1722 = vmul.f32 %v1713, %v1721
      %v1723 = vmul.f32 %v1714, %v1721
      %v1724 = vmul.f32 %v1715, %v1721
      %v1725 = vmul.f32 %v1716, %v1721
      %v1726 = vmul.f32 %v1717, %v1721
      %v1727 = vmul.f32 %v1718, %v1721
      %v1728 = vmul.f32 %v1719, %v1721
      %v1729 = vmul.f32 %v1720, %v1721
      %v1730 = vperm.slane %v289, 0
      %v1731 = vadd.f32 %v1722, %v1730
      %v1732 = vadd.f32 %v1723, %v1730
      %v1733 = vadd.f32 %v1724, %v1730
      %v1734 = vadd.f32 %v1725, %v1730
      %v1735 = vadd.f32 %v1726, %v1730
      %v1736 = vadd.f32 %v1727, %v1730
      %v1737 = vadd.f32 %v1728, %v1730
      %v1738 = vadd.f32 %v1729, %v1730
      %1739 = vst.msk [vmem:[%s278] sm:$0xff] %vm940, %v1731
      %1740 = vst.msk [vmem:[%s278 + $0x8] sm:$0xff] %vm940, %v1732
      %1741 = vst.msk [vmem:[%s278 + $0x10] sm:$0xff] %vm940, %v1733
      %1742 = vst.msk [vmem:[%s278 + $0x18] sm:$0xff] %vm940, %v1734
      %1743 = vst.msk [vmem:[%s278 + $0x20] sm:$0xff] %vm940, %v1735
      %1744 = vst.msk [vmem:[%s278 + $0x28] sm:$0xff] %vm940, %v1736
      %1745 = vst.msk [vmem:[%s278 + $0x30] sm:$0xff] %vm940, %v1737
      %1746 = vst.msk [vmem:[%s278 + $0x38] sm:$0xff] %vm940, %v1738
      %p1747 = scmp.lt.s32.totalorder %s18, 1
      %s1748 = scalar_select %p1747, %s18, 1
      %s1749 = smul.addr %s1748, 8
      %s1750 = smul.addr %s1749, 8
      %s1751 = scalar_lea.vmem %s7, %s1750
      // Predicated region
      $region49: #{sgap_forward.1} parent=47 // pred_check
        %p1752 = pneg %p188
      $region50: #{sgap_forward.1} parent=47 // pred_check_branch
        %1754 = sbr.rel (%p1752) target = $region52
      $region51: #{sgap_forward.1} parent=47 // pred_region
        _
      $region52: #{sgap_forward.1} parent=47 // pred_fallthru
        _
    $region48: #{sgap_forward.1} parent=5 // pred_fallthru
      _
    %p1755 = scmp.le.s32.totalorder 2, %s13
    // Predicated region
    $region53: #{sgap_forward.1} parent=5 // pred_check
      %p1756 = pneg %p1755
    $region54: #{sgap_forward.1} parent=5 // pred_check_branch
      %1758 = sbr.rel (%p1756) target = $region56
    $region55: #{sgap_forward.1} parent=5 // pred_region
      %s1759 = ssub.s32 %s13, 2
      // Predicated region
      $region57: #{sgap_forward.1} parent=55 // pred_check
        %p1760 = pneg %p194
      $region58: #{sgap_forward.1} parent=55 // pred_check_branch
        %1762 = sbr.rel (%p1760) target = $region60
      $region59: #{sgap_forward.1} parent=55 // pred_region
        %p1763 = scmp.lt.s32.totalorder %s19, 1
        %s1764 = scalar_select %p1763, %s19, 1
        %s1765 = smul.addr %s1764, 8
        %s1766 = smul.addr %s1765, 8
        %s1767 = scalar_lea.vmem %s7, %s1766
      $region60: #{sgap_forward.1} parent=55 // pred_fallthru
        _
    $region56: #{sgap_forward.1} parent=5 // pred_fallthru
      _
  $region6: #{sgap_forward.1} parent=0 // loop_footer
    %s17 = sadd.s32 1, %s13
  $region7: #{sgap_forward.1} parent=0 // loop_footer_branch
    %12 = sbr.rel target = $region3
  $region8: #{sgap_forward.1} parent=0 // loop_exit
    _

</llo_original>
